<compile_context>
chip_gen: v5e
topology: v5e:2x2
jax: 0.10.0
libtpu: 0.0.40
codegen_flags: <defaults>
</compile_context>

<pallas_src>
import math
from functools import partial

import jax
import jax.numpy as jnp
from jax.experimental import pallas as pl
from jax.experimental.pallas import tpu as pltpu

# Leave headroom on v7x's 64 MiB physical VMEM per TensorCore.
_VMEM_LIMIT = 56 * 1024 * 1024
_NEG_INF = -1e30


# ----------------------------- in-kernel helpers -----------------------------


def _rmsnorm(x, w, eps):
    # x: (rows, D) f32, w: (1, D) f32
    ms = jnp.mean(x * x, axis=-1, keepdims=True)
    return x * jax.lax.rsqrt(ms + eps) * w


def _rotate_half(t):
    """Rotate-half over the grouped [all-real | all-imag] layout (one roll for all heads)."""
    w = t.shape[-1]
    half = w // 2
    if w % 256 == 0:
        # lane-aligned width: XLU rotate slot, free next to MXU/VPU work
        return pltpu.roll(t, shift=half, axis=t.ndim - 1)
    # toy widths (< 128 lanes): slice+concat avoids sub-vreg rotate edge cases
    return jnp.concatenate([t[..., half:], t[..., :half]], axis=-1)


# ----------------------------- kernels ---------------------------------------


def _qkv_rope_kernel(x_ref, cos_q_ref, sin_q_ref, cos_k_ref, sin_k_ref,
                     attn_nw_ref, wq_ref, wk_ref, wv_ref,
                     q_ref, k_ref, v_ref, *, eps):
    x = x_ref[0]                                            # (tq, D) f32
    xn = _rmsnorm(x, attn_nw_ref[...], eps).astype(jnp.bfloat16)
    # bf16 MXU inputs, f32 accumulation; 1/sqrt(head_dim) folded into wq (glue).
    q = jnp.dot(xn, wq_ref[...], preferred_element_type=jnp.float32)
    k = jnp.dot(xn, wk_ref[...], preferred_element_type=jnp.float32)
    v = jnp.dot(xn, wv_ref[...], preferred_element_type=jnp.float32)
    # RoPE on all heads at once via the grouped rotate-half layout.
    q = q * cos_q_ref[...] + _rotate_half(q) * sin_q_ref[...]
    k = k * cos_k_ref[...] + _rotate_half(k) * sin_k_ref[...]
    q_ref[0] = q.astype(jnp.bfloat16)
    k_ref[0] = k.astype(jnp.bfloat16)
    v_ref[0] = v.astype(jnp.bfloat16)


def _flash_attn_kernel(q_ref, k_ref, v_ref, o_ref, m_sc, l_sc, acc_sc, *, tq, tk):
    qi = pl.program_id(2)
    ki = pl.program_id(3)
    q_start = qi * tq
    k_start = ki * tk

    @pl.when(ki == 0)
    def _():
        m_sc[...] = jnp.full_like(m_sc, -jnp.inf)
        l_sc[...] = jnp.zeros_like(l_sc)
        acc_sc[...] = jnp.zeros_like(acc_sc)

    # Causal tile classification: interior tiles need no mask; tiles strictly
    # above the diagonal are skipped entirely (no MXU / VPU work).
    interior = (k_start + tk - 1) <= q_start
    straddle = jnp.logical_and(k_start <= q_start + tq - 1,
                               jnp.logical_not(interior))

    def step(apply_mask):
        q = q_ref[0, 0]                                     # (tq, hd) bf16
        k = k_ref[0, 0]                                     # (tk, hd) bf16
        s = jnp.dot(q, k.T, preferred_element_type=jnp.float32)
        if apply_mask:
            rows = q_start + jax.lax.broadcasted_iota(jnp.int32, s.shape, 0)
            cols = k_start + jax.lax.broadcasted_iota(jnp.int32, s.shape, 1)
            s = jnp.where(cols <= rows, s, _NEG_INF)
        m_prev = m_sc[...]
        m_new = jnp.maximum(m_prev, jnp.max(s, axis=-1, keepdims=True))
        alpha = jnp.exp(m_prev - m_new)
        p = jnp.exp(s - m_new)
        l_sc[...] = alpha * l_sc[...] + jnp.sum(p, axis=-1, keepdims=True)
        acc_sc[...] = alpha * acc_sc[...] + jnp.dot(
            p.astype(jnp.bfloat16), v_ref[0, 0], preferred_element_type=jnp.float32)
        m_sc[...] = m_new

    @pl.when(interior)
    def _():
        step(apply_mask=False)

    @pl.when(straddle)
    def _():
        step(apply_mask=True)

    # Last KV tile that intersects this query tile under the causal mask.
    ki_last = (q_start + tq - 1) // tk

    @pl.when(ki == ki_last)
    def _():
        # approx reciprocal on the EUP; use approx=False if tighter accuracy is needed
        inv_l = pl.reciprocal(l_sc[...], approx=True)
        o_ref[0, 0] = (acc_sc[...] * inv_l).astype(o_ref.dtype)


def _wo_ffn_kernel(x_ref, ctx_ref, wo_ref, ffn_nw_ref, w1_ref, w3_ref, w2_ref,
                   out_ref, h_sc, hn_sc, acc_sc, *, eps):
    ht = pl.program_id(2)

    @pl.when(ht == 0)
    def _():
        attn = jnp.dot(ctx_ref[0], wo_ref[...], preferred_element_type=jnp.float32)
        h = x_ref[0] + attn                                  # residual, f32
        h_sc[...] = h
        hn_sc[...] = _rmsnorm(h, ffn_nw_ref[...], eps).astype(jnp.bfloat16)
        acc_sc[...] = jnp.zeros_like(acc_sc)

    hn = hn_sc[...]                                          # (tq, D) bf16
    g = jnp.dot(hn, w1_ref[...], preferred_element_type=jnp.float32)
    u = jnp.dot(hn, w3_ref[...], preferred_element_type=jnp.float32)
    act = (g * jax.nn.sigmoid(g) * u).astype(jnp.bfloat16)   # silu(g) * u in f32
    acc_sc[...] += jnp.dot(act, w2_ref[...], preferred_element_type=jnp.float32)

    @pl.when(ht == pl.num_programs(2) - 1)
    def _():
        out_ref[0] = h_sc[...] + acc_sc[...]


# ----------------------------- wrapper ---------------------------------------


def _pick_tile(n, pref, mult):
    """Largest tile <= pref that divides n and is a multiple of `mult` (else full n)."""
    if n <= pref:
        return n
    t = (pref // mult) * mult
    while t >= mult:
        if n % t == 0:
            return t
        t -= mult
    return n


def _spec(shape, index_map, *, single_buffer=False):
    if single_buffer:
        # grid-invariant operand -> single-buffer it (halves its VMEM residency)
        return pl.BlockSpec(shape, index_map, pipeline_mode=pl.Buffered(1))
    return pl.BlockSpec(shape, index_map)


def transformer_block(x, params, rope_tabs, *, n_heads, n_kv_heads, eps,
                      single_buffer_weights=True):
    B, S, D = x.shape
    hd = D // n_heads
    half = hd // 2
    n_rep = n_heads // n_kv_heads
    wq, wk, wv, wo, w1, w2, w3, attn_nw, ffn_nw = params
    cos_q, sin_q, cos_k, sin_k = rope_tabs
    Wq = n_heads * hd
    Wk = n_kv_heads * hd
    hidden = w1.shape[1]
    sb = single_buffer_weights

    tq = _pick_tile(S, 256, 8)          # seq / query tile
    tk = _pick_tile(S, 256, 8)          # kv tile
    th = _pick_tile(hidden, 512, 128)   # FFN hidden reduction tile

    cp = pltpu.CompilerParams

    # ---- 1) RMSNorm + QKV projection + RoPE ---------------------------------
    q, k, v = pl.pallas_call(
        partial(_qkv_rope_kernel, eps=eps),
        out_shape=(jax.ShapeDtypeStruct((B, S, Wq), jnp.bfloat16),
                   jax.ShapeDtypeStruct((B, S, Wk), jnp.bfloat16),
                   jax.ShapeDtypeStruct((B, S, Wk), jnp.bfloat16)),
        grid=(B, S // tq),
        in_specs=[
            pl.BlockSpec((1, tq, D), lambda b, si: (b, si, 0)),
            pl.BlockSpec((tq, Wq), lambda b, si: (si, 0)),
            pl.BlockSpec((tq, Wq), lambda b, si: (si, 0)),
            pl.BlockSpec((tq, Wk), lambda b, si: (si, 0)),
            pl.BlockSpec((tq, Wk), lambda b, si: (si, 0)),
            _spec((1, D), lambda b, si: (0, 0), single_buffer=sb),
            _spec((D, Wq), lambda b, si: (0, 0), single_buffer=sb),
            _spec((D, Wk), lambda b, si: (0, 0), single_buffer=sb),
            _spec((D, Wk), lambda b, si: (0, 0), single_buffer=sb),
        ],
        out_specs=(pl.BlockSpec((1, tq, Wq), lambda b, si: (b, si, 0)),
                   pl.BlockSpec((1, tq, Wk), lambda b, si: (b, si, 0)),
                   pl.BlockSpec((1, tq, Wk), lambda b, si: (b, si, 0))),
        compiler_params=cp(dimension_semantics=("parallel", "parallel"),
                           vmem_limit_bytes=_VMEM_LIMIT),
    )(x, cos_q, sin_q, cos_k, sin_k, attn_nw, wq, wk, wv)

    # Layout plumbing (plain XLA): grouped rotate-half columns -> per-head (B,H,S,hd).
    q4 = q.reshape(B, S, 2, n_heads, half).transpose(0, 3, 1, 2, 4).reshape(B, n_heads, S, hd)
    k4 = k.reshape(B, S, 2, n_kv_heads, half).transpose(0, 3, 1, 2, 4).reshape(B, n_kv_heads, S, hd)
    v4 = v.reshape(B, S, n_kv_heads, hd).transpose(0, 2, 1, 3)

    # ---- 2) flash attention (online softmax + causal tile skipping, GQA) ----
    ctx4 = pl.pallas_call(
        partial(_flash_attn_kernel, tq=tq, tk=tk),
        out_shape=jax.ShapeDtypeStruct((B, n_heads, S, hd), jnp.bfloat16),
        grid=(B, n_heads, S // tq, S // tk),
        in_specs=[
            pl.BlockSpec((1, 1, tq, hd), lambda b, h, qi, ki: (b, h, qi, 0)),
            pl.BlockSpec((1, 1, tk, hd), lambda b, h, qi, ki: (b, h // n_rep, ki, 0)),
            pl.BlockSpec((1, 1, tk, hd), lambda b, h, qi, ki: (b, h // n_rep, ki, 0)),
        ],
        out_specs=pl.BlockSpec((1, 1, tq, hd), lambda b, h, qi, ki: (b, h, qi, 0)),
        scratch_shapes=[pltpu.VMEM((tq, 1), jnp.float32),
                        pltpu.VMEM((tq, 1), jnp.float32),
                        pltpu.VMEM((tq, hd), jnp.float32)],
        compiler_params=cp(
            dimension_semantics=("parallel", "parallel", "parallel", "arbitrary"),
            vmem_limit_bytes=_VMEM_LIMIT),
    )(q4, k4, v4)

    # per-head context back to a lane-dense (B, S, D) slab for the wo matmul
    ctx = ctx4.transpose(0, 2, 1, 3).reshape(B, S, D)

    # ---- 3) wo + residual + RMSNorm + SwiGLU FFN (hidden-dim reduction) -----
    out = pl.pallas_call(
        partial(_wo_ffn_kernel, eps=eps),
        out_shape=jax.ShapeDtypeStruct((B, S, D), jnp.float32),
        grid=(B, S // tq, hidden // th),
        in_specs=[
            pl.BlockSpec((1, tq, D), lambda b, si, ht: (b, si, 0)),
            pl.BlockSpec((1, tq, D), lambda b, si, ht: (b, si, 0)),
            _spec((D, D), lambda b, si, ht: (0, 0), single_buffer=sb),
            _spec((1, D), lambda b, si, ht: (0, 0), single_buffer=sb),
            pl.BlockSpec((D, th), lambda b, si, ht: (0, ht)),
            pl.BlockSpec((D, th), lambda b, si, ht: (0, ht)),
            pl.BlockSpec((th, D), lambda b, si, ht: (ht, 0)),
        ],
        out_specs=pl.BlockSpec((1, tq, D), lambda b, si, ht: (b, si, 0)),
        scratch_shapes=[pltpu.VMEM((tq, D), jnp.float32),   # h (residual)
                        pltpu.VMEM((tq, D), jnp.bfloat16),  # rmsnorm(h)
                        pltpu.VMEM((tq, D), jnp.float32)],  # FFN accumulator
        compiler_params=cp(dimension_semantics=("parallel", "parallel", "arbitrary"),
                           vmem_limit_bytes=_VMEM_LIMIT),
    )(x, ctx, wo, ffn_nw, w1, w3, w2)

    return out


# ----------------------------- glue / setup ----------------------------------


def make_rope_tables(seq_len, head_dim, theta, n_heads, n_kv_heads):
    """Full-width cos / signed-sin tables for the grouped rotate-half layout,
    plus raw (S, head_dim/2) cos/sin for the reference."""
    half = head_dim // 2
    freqs = 1.0 / (theta ** (jnp.arange(0, head_dim, 2, dtype=jnp.float32) / head_dim))
    t = jnp.arange(seq_len, dtype=jnp.float32)
    ang = jnp.outer(t, freqs)                      # (S, half)
    cos, sin = jnp.cos(ang), jnp.sin(ang)

    def full_tabs(heads):
        cos_f = jnp.tile(cos, (1, 2 * heads))                                  # [c..|c..]
        sin_f = jnp.concatenate([jnp.tile(-sin, (1, heads)),
                                 jnp.tile(sin, (1, heads))], axis=-1)          # [-s..|s..]
        return cos_f, sin_f

    cos_q, sin_q = full_tabs(n_heads)
    cos_k, sin_k = full_tabs(n_kv_heads)
    return (cos_q, sin_q, cos_k, sin_k), (cos, sin)


def group_permute_cols(w, head_dim):
    """Reorder projection columns from per-head interleaved [r0,i0,r1,i1,...] into the
    globally grouped [all heads' real | all heads' imag] layout used by the kernel."""
    n_out = w.shape[1]
    heads = n_out // head_dim
    half = head_dim // 2
    first = (head_dim * jnp.arange(heads)[:, None]
             + 2 * jnp.arange(half)[None, :]).reshape(-1)
    perm = jnp.concatenate([first, first + 1])
    return w[:, perm]


def reference_block(x, fweights, cos, sin, mask, *, n_heads, n_kv_heads, eps):
    # pure-JAX f32 reference mirroring the PyTorch forward exactly
    wq, wk, wv, wo, w1, w2, w3, attn_nw, ffn_nw = fweights
    B, S, D = x.shape
    hd = D // n_heads
    n_rep = n_heads // n_kv_heads

    def rms(t, w):
        return t * jax.lax.rsqrt(jnp.mean(t * t, -1, keepdims=True) + eps) * w[0]

    def rope(t):  # t: (B,S,H,hd), interleaved complex pairs
        a, b = t[..., 0::2], t[..., 1::2]
        c, s = cos[None, :, None, :], sin[None, :, None, :]
        return jnp.stack([a * c - b * s, a * s + b * c], axis=-1).reshape(t.shape)

    xn = rms(x, attn_nw)
    q = (xn @ wq).reshape(B, S, n_heads, hd)
    k = (xn @ wk).reshape(B, S, n_kv_heads, hd)
    v = (xn @ wv).reshape(B, S, n_kv_heads, hd)
    q, k = rope(q), rope(k)
    k = jnp.repeat(k, n_rep, axis=2)
    v = jnp.repeat(v, n_rep, axis=2)
    q, k, v = (t.transpose(0, 2, 1, 3) for t in (q, k, v))
    s = q @ k.transpose(0, 1, 3, 2) / math.sqrt(hd) + mask
    p = jax.nn.softmax(s, axis=-1)
    o = (p @ v).transpose(0, 2, 1, 3).reshape(B, S, D)
    h = x + o @ wo
    hn = rms(h, ffn_nw)
    return h + (jax.nn.silu(hn @ w1) * (hn @ w3)) @ w2


if __name__ == "__main__":
    # small ModelArgs-consistent config
    B, S = 2, 8
    dim, n_heads, n_kv_heads = 64, 4, 2
    head_dim = dim // n_heads
    multiple_of = 32
    eps = 1e-5
    rope_theta = 500000.0

    hidden = int(2 * (4 * dim) / 3)
    hidden = multiple_of * ((hidden + multiple_of - 1) // multiple_of)   # -> 192

    key = jax.random.PRNGKey(0)
    ks = jax.random.split(key, 10)

    def init(k, shape):
        return jax.random.normal(k, shape, jnp.float32) / math.sqrt(shape[0])

    wq = init(ks[0], (dim, n_heads * head_dim))
    wk = init(ks[1], (dim, n_kv_heads * head_dim))
    wv = init(ks[2], (dim, n_kv_heads * head_dim))
    wo = init(ks[3], (n_heads * head_dim, dim))
    w1 = init(ks[4], (dim, hidden))
    w2 = init(ks[5], (hidden, dim))
    w3 = init(ks[6], (dim, hidden))
    attn_nw = jnp.ones((1, dim), jnp.float32)
    ffn_nw = jnp.ones((1, dim), jnp.float32)

    x = jax.random.normal(ks[7], (B, S, dim), jnp.float32)

    rope_tabs, (cos, sin) = make_rope_tables(S, head_dim, rope_theta,
                                             n_heads, n_kv_heads)

    # kernel weights: grouped-RoPE permuted Q/K (attention scale folded into wq), bf16
    bf16 = jnp.bfloat16
    scale = 1.0 / math.sqrt(head_dim)
    kparams = (
        (group_permute_cols(wq, head_dim) * scale).astype(bf16),
        group_permute_cols(wk, head_dim).astype(bf16),
        wv.astype(bf16), wo.astype(bf16),
        w1.astype(bf16), w2.astype(bf16), w3.astype(bf16),
        attn_nw, ffn_nw,
    )

    run = partial(transformer_block, x, kparams, rope_tabs,
                  n_heads=n_heads, n_kv_heads=n_kv_heads, eps=eps)
    try:
        out = run(single_buffer_weights=True)
    except Exception:
        # fallback for Pallas versions that reject single-buffered (Buffered(1)) specs
        out = run(single_buffer_weights=False)
    out = jax.block_until_ready(out)

    # reference (f32 weights, explicit causal mask, start_pos = 0 prefill)
    mask = jnp.triu(jnp.full((S, S), -1e30, jnp.float32), k=1)
    ref = reference_block(x, (wq, wk, wv, wo, w1, w2, w3, attn_nw, ffn_nw),
                          cos, sin, mask,
                          n_heads=n_heads, n_kv_heads=n_kv_heads, eps=eps)
    ref = jax.block_until_ready(ref)

    assert out.shape == (B, S, dim)
    assert bool(jnp.all(jnp.isfinite(out)))
    max_diff = float(jnp.max(jnp.abs(out - ref)))
    mean_diff = float(jnp.mean(jnp.abs(out - ref)))
    # tolerance accounts for bf16 MXU inputs vs. the all-f32 reference
    assert max_diff < 1.5e-1, f"mismatch vs reference: max={max_diff}"
    assert mean_diff < 2e-2, f"mismatch vs reference: mean={mean_diff}"

    print("KERNEL_OK")
</pallas_src>

<mosaic_0001>
module attributes {stable_mosaic.version = 11 : i64} {
  func.func @_qkv_rope_kernel(%arg0: i32, %arg1: i32, %arg2: memref<1x8x64xf32, #tpu.memory_space<vmem>>, %arg3: memref<8x64xf32, #tpu.memory_space<vmem>>, %arg4: memref<8x64xf32, #tpu.memory_space<vmem>>, %arg5: memref<8x32xf32, #tpu.memory_space<vmem>>, %arg6: memref<8x32xf32, #tpu.memory_space<vmem>>, %arg7: memref<1x64xf32, #tpu.memory_space<vmem>>, %arg8: memref<64x64xbf16, #tpu.memory_space<vmem>>, %arg9: memref<64x32xbf16, #tpu.memory_space<vmem>>, %arg10: memref<64x32xbf16, #tpu.memory_space<vmem>>, %arg11: memref<1x8x64xbf16, #tpu.memory_space<vmem>>, %arg12: memref<1x8x32xbf16, #tpu.memory_space<vmem>>, %arg13: memref<1x8x32xbf16, #tpu.memory_space<vmem>>) attributes {dimension_semantics = [#tpu.dimension_semantics<parallel>, #tpu.dimension_semantics<parallel>], iteration_bounds = array<i64: 2, 1>, scalar_prefetch = 0 : i64, scratch_operands = 0 : i64, tpu.core_type = #tpu.core_type<tc>, window_params = [{transform_indices = @transform_0, window_bounds = array<i64: 1, 8, 64>}, {transform_indices = @transform_1, window_bounds = array<i64: 8, 64>}, {transform_indices = @transform_2, window_bounds = array<i64: 8, 64>}, {transform_indices = @transform_3, window_bounds = array<i64: 8, 32>}, {transform_indices = @transform_4, window_bounds = array<i64: 8, 32>}, {pipeline_mode = #tpu.pipeline_mode<synchronous>, transform_indices = @transform_5, window_bounds = array<i64: 1, 64>}, {pipeline_mode = #tpu.pipeline_mode<synchronous>, transform_indices = @transform_6, window_bounds = array<i64: 64, 64>}, {pipeline_mode = #tpu.pipeline_mode<synchronous>, transform_indices = @transform_7, window_bounds = array<i64: 64, 32>}, {pipeline_mode = #tpu.pipeline_mode<synchronous>, transform_indices = @transform_8, window_bounds = array<i64: 64, 32>}, {transform_indices = @transform_9, window_bounds = array<i64: 1, 8, 64>}, {transform_indices = @transform_10, window_bounds = array<i64: 1, 8, 32>}, {transform_indices = @transform_11, window_bounds = array<i64: 1, 8, 32>}]} {
    %c0 = arith.constant 0 : index
    %c0_0 = arith.constant 0 : index
    %c0_1 = arith.constant 0 : index
    %0 = vector.load %arg2[%c0, %c0_0, %c0_1] : memref<1x8x64xf32, #tpu.memory_space<vmem>>, vector<1x8x64xf32>
    %1 = vector.shape_cast %0 : vector<1x8x64xf32> to vector<8x64xf32>
    %c0_2 = arith.constant 0 : index
    %c0_3 = arith.constant 0 : index
    %2 = vector.load %arg7[%c0_2, %c0_3] : memref<1x64xf32, #tpu.memory_space<vmem>>, vector<1x64xf32>
    %3 = arith.mulf %1, %1 : vector<8x64xf32>
    %cst = arith.constant dense<0.000000e+00> : vector<8xf32>
    %4 = vector.multi_reduction <add>, %3, %cst [1] : vector<8x64xf32> to vector<8xf32>
    %5 = vector.shape_cast %4 : vector<8xf32> to vector<8x1xf32>
    %cst_4 = arith.constant 6.400000e+01 : f32
    %6 = vector.broadcast %cst_4 : f32 to vector<8x1xf32>
    %7 = arith.divf %5, %6 : vector<8x1xf32>
    %cst_5 = arith.constant 9.99999974E-6 : f32
    %8 = vector.broadcast %cst_5 : f32 to vector<8x1xf32>
    %9 = arith.addf %7, %8 : vector<8x1xf32>
    %10 = math.rsqrt %9 : vector<8x1xf32>
    %11 = vector.broadcast %10 : vector<8x1xf32> to vector<8x64xf32>
    %12 = arith.mulf %1, %11 : vector<8x64xf32>
    %13 = vector.broadcast %2 : vector<1x64xf32> to vector<8x64xf32>
    %14 = arith.mulf %12, %13 : vector<8x64xf32>
    %15 = arith.truncf %14 : vector<8x64xf32> to vector<8x64xbf16>
    %c0_6 = arith.constant 0 : index
    %c0_7 = arith.constant 0 : index
    %16 = vector.load %arg8[%c0_6, %c0_7] : memref<64x64xbf16, #tpu.memory_space<vmem>>, vector<64x64xbf16>
    %cst_8 = arith.constant dense<0.000000e+00> : vector<8x64xf32>
    %17 = tpu.matmul %15, %16, %cst_8 {dimension_numbers = #tpu.dot_dimension_numbers<[1], [0], [0], [1], [0, 0, 1, 1], [], []>} : vector<8x64xbf16>, vector<64x64xbf16>, vector<8x64xf32> -> vector<8x64xf32>
    %c0_9 = arith.constant 0 : index
    %c0_10 = arith.constant 0 : index
    %18 = vector.load %arg9[%c0_9, %c0_10] : memref<64x32xbf16, #tpu.memory_space<vmem>>, vector<64x32xbf16>
    %cst_11 = arith.constant dense<0.000000e+00> : vector<8x32xf32>
    %19 = tpu.matmul %15, %18, %cst_11 {dimension_numbers = #tpu.dot_dimension_numbers<[1], [0], [0], [1], [0, 0, 1, 1], [], []>} : vector<8x64xbf16>, vector<64x32xbf16>, vector<8x32xf32> -> vector<8x32xf32>
    %c0_12 = arith.constant 0 : index
    %c0_13 = arith.constant 0 : index
    %20 = vector.load %arg10[%c0_12, %c0_13] : memref<64x32xbf16, #tpu.memory_space<vmem>>, vector<64x32xbf16>
    %cst_14 = arith.constant dense<0.000000e+00> : vector<8x32xf32>
    %21 = tpu.matmul %15, %20, %cst_14 {dimension_numbers = #tpu.dot_dimension_numbers<[1], [0], [0], [1], [0, 0, 1, 1], [], []>} : vector<8x64xbf16>, vector<64x32xbf16>, vector<8x32xf32> -> vector<8x32xf32>
    %c0_15 = arith.constant 0 : index
    %c0_16 = arith.constant 0 : index
    %22 = vector.load %arg3[%c0_15, %c0_16] : memref<8x64xf32, #tpu.memory_space<vmem>>, vector<8x64xf32>
    %23 = arith.mulf %17, %22 : vector<8x64xf32>
    %24 = vector.extract_strided_slice %17 {offsets = [0, 32], sizes = [8, 32], strides = [1, 1]} : vector<8x64xf32> to vector<8x32xf32>
    %25 = vector.extract_strided_slice %17 {offsets = [0, 0], sizes = [8, 32], strides = [1, 1]} : vector<8x64xf32> to vector<8x32xf32>
    %26 = tpu.concatenate %24, %25 in 1 : vector<8x32xf32>, vector<8x32xf32> -> vector<8x64xf32>
    %c0_17 = arith.constant 0 : index
    %c0_18 = arith.constant 0 : index
    %27 = vector.load %arg4[%c0_17, %c0_18] : memref<8x64xf32, #tpu.memory_space<vmem>>, vector<8x64xf32>
    %28 = arith.mulf %26, %27 : vector<8x64xf32>
    %29 = arith.addf %23, %28 : vector<8x64xf32>
    %c0_19 = arith.constant 0 : index
    %c0_20 = arith.constant 0 : index
    %30 = vector.load %arg5[%c0_19, %c0_20] : memref<8x32xf32, #tpu.memory_space<vmem>>, vector<8x32xf32>
    %31 = arith.mulf %19, %30 : vector<8x32xf32>
    %32 = vector.extract_strided_slice %19 {offsets = [0, 16], sizes = [8, 16], strides = [1, 1]} : vector<8x32xf32> to vector<8x16xf32>
    %33 = vector.extract_strided_slice %19 {offsets = [0, 0], sizes = [8, 16], strides = [1, 1]} : vector<8x32xf32> to vector<8x16xf32>
    %34 = tpu.concatenate %32, %33 in 1 : vector<8x16xf32>, vector<8x16xf32> -> vector<8x32xf32>
    %c0_21 = arith.constant 0 : index
    %c0_22 = arith.constant 0 : index
    %35 = vector.load %arg6[%c0_21, %c0_22] : memref<8x32xf32, #tpu.memory_space<vmem>>, vector<8x32xf32>
    %36 = arith.mulf %34, %35 : vector<8x32xf32>
    %37 = arith.addf %31, %36 : vector<8x32xf32>
    %38 = arith.truncf %29 : vector<8x64xf32> to vector<8x64xbf16>
    %c0_23 = arith.constant 0 : index
    %c0_24 = arith.constant 0 : index
    %c0_25 = arith.constant 0 : index
    %39 = vector.load %arg11[%c0_23, %c0_24, %c0_25] : memref<1x8x64xbf16, #tpu.memory_space<vmem>>, vector<1x8x64xbf16>
    %40 = vector.shape_cast %39 : vector<1x8x64xbf16> to vector<8x64xbf16>
    %41 = vector.shape_cast %38 : vector<8x64xbf16> to vector<1x8x64xbf16>
    tpu.vector_store %arg11[%c0_23, %c0_24, %c0_25], %41 {strides = array<i32>} : memref<1x8x64xbf16, #tpu.memory_space<vmem>>, vector<1x8x64xbf16>,
    %42 = arith.truncf %37 : vector<8x32xf32> to vector<8x32xbf16>
    %c0_26 = arith.constant 0 : index
    %c0_27 = arith.constant 0 : index
    %c0_28 = arith.constant 0 : index
    %43 = vector.load %arg12[%c0_26, %c0_27, %c0_28] : memref<1x8x32xbf16, #tpu.memory_space<vmem>>, vector<1x8x32xbf16>
    %44 = vector.shape_cast %43 : vector<1x8x32xbf16> to vector<8x32xbf16>
    %45 = vector.shape_cast %42 : vector<8x32xbf16> to vector<1x8x32xbf16>
    tpu.vector_store %arg12[%c0_26, %c0_27, %c0_28], %45 {strides = array<i32>} : memref<1x8x32xbf16, #tpu.memory_space<vmem>>, vector<1x8x32xbf16>,
    %46 = arith.truncf %21 : vector<8x32xf32> to vector<8x32xbf16>
    %c0_29 = arith.constant 0 : index
    %c0_30 = arith.constant 0 : index
    %c0_31 = arith.constant 0 : index
    %47 = vector.load %arg13[%c0_29, %c0_30, %c0_31] : memref<1x8x32xbf16, #tpu.memory_space<vmem>>, vector<1x8x32xbf16>
    %48 = vector.shape_cast %47 : vector<1x8x32xbf16> to vector<8x32xbf16>
    %49 = vector.shape_cast %46 : vector<8x32xbf16> to vector<1x8x32xbf16>
    tpu.vector_store %arg13[%c0_29, %c0_30, %c0_31], %49 {strides = array<i32>} : memref<1x8x32xbf16, #tpu.memory_space<vmem>>, vector<1x8x32xbf16>,
    return
  }
  func.func @transform_0(%arg0: i32, %arg1: i32) -> (i32, i32, i32) {
    %c0_i32 = arith.constant 0 : i32
    %c0_i32_0 = arith.constant 0 : i32
    return %arg0, %arg1, %c0_i32 : i32, i32, i32
  }
  func.func @transform_1(%arg0: i32, %arg1: i32) -> (i32, i32) {
    %c0_i32 = arith.constant 0 : i32
    %c0_i32_0 = arith.constant 0 : i32
    return %arg1, %c0_i32 : i32, i32
  }
  func.func @transform_2(%arg0: i32, %arg1: i32) -> (i32, i32) {
    %c0_i32 = arith.constant 0 : i32
    %c0_i32_0 = arith.constant 0 : i32
    return %arg1, %c0_i32 : i32, i32
  }
  func.func @transform_3(%arg0: i32, %arg1: i32) -> (i32, i32) {
    %c0_i32 = arith.constant 0 : i32
    %c0_i32_0 = arith.constant 0 : i32
    return %arg1, %c0_i32 : i32, i32
  }
  func.func @transform_4(%arg0: i32, %arg1: i32) -> (i32, i32) {
    %c0_i32 = arith.constant 0 : i32
    %c0_i32_0 = arith.constant 0 : i32
    return %arg1, %c0_i32 : i32, i32
  }
  func.func @transform_5(%arg0: i32, %arg1: i32) -> (i32, i32) {
    %c0_i32 = arith.constant 0 : i32
    %c0_i32_0 = arith.constant 0 : i32
    %c0_i32_1 = arith.constant 0 : i32
    return %c0_i32, %c0_i32_0 : i32, i32
  }
  func.func @transform_6(%arg0: i32, %arg1: i32) -> (i32, i32) {
    %c0_i32 = arith.constant 0 : i32
    %c0_i32_0 = arith.constant 0 : i32
    %c0_i32_1 = arith.constant 0 : i32
    return %c0_i32, %c0_i32_0 : i32, i32
  }
  func.func @transform_7(%arg0: i32, %arg1: i32) -> (i32, i32) {
    %c0_i32 = arith.constant 0 : i32
    %c0_i32_0 = arith.constant 0 : i32
    %c0_i32_1 = arith.constant 0 : i32
    return %c0_i32, %c0_i32_0 : i32, i32
  }
  func.func @transform_8(%arg0: i32, %arg1: i32) -> (i32, i32) {
    %c0_i32 = arith.constant 0 : i32
    %c0_i32_0 = arith.constant 0 : i32
    %c0_i32_1 = arith.constant 0 : i32
    return %c0_i32, %c0_i32_0 : i32, i32
  }
  func.func @transform_9(%arg0: i32, %arg1: i32) -> (i32, i32, i32) {
    %c0_i32 = arith.constant 0 : i32
    %c0_i32_0 = arith.constant 0 : i32
    return %arg0, %arg1, %c0_i32 : i32, i32, i32
  }
  func.func @transform_10(%arg0: i32, %arg1: i32) -> (i32, i32, i32) {
    %c0_i32 = arith.constant 0 : i32
    %c0_i32_0 = arith.constant 0 : i32
    return %arg0, %arg1, %c0_i32 : i32, i32, i32
  }
  func.func @transform_11(%arg0: i32, %arg1: i32) -> (i32, i32, i32) {
    %c0_i32 = arith.constant 0 : i32
    %c0_i32_0 = arith.constant 0 : i32
    return %arg0, %arg1, %c0_i32 : i32, i32, i32
  }
}

module attributes {stable_mosaic.version = 11 : i64} {
  func.func @_qkv_rope_kernel(%arg0: i32, %arg1: i32, %arg2: memref<1x8x64xf32, #tpu.memory_space<vmem>>, %arg3: memref<8x64xf32, #tpu.memory_space<vmem>>, %arg4: memref<8x64xf32, #tpu.memory_space<vmem>>, %arg5: memref<8x32xf32, #tpu.memory_space<vmem>>, %arg6: memref<8x32xf32, #tpu.memory_space<vmem>>, %arg7: memref<1x64xf32, #tpu.memory_space<vmem>>, %arg8: memref<64x64xbf16, #tpu.memory_space<vmem>>, %arg9: memref<64x32xbf16, #tpu.memory_space<vmem>>, %arg10: memref<64x32xbf16, #tpu.memory_space<vmem>>, %arg11: memref<1x8x64xbf16, #tpu.memory_space<vmem>>, %arg12: memref<1x8x32xbf16, #tpu.memory_space<vmem>>, %arg13: memref<1x8x32xbf16, #tpu.memory_space<vmem>>) attributes {dimension_semantics = [#tpu.dimension_semantics<parallel>, #tpu.dimension_semantics<parallel>], iteration_bounds = array<i64: 2, 1>, scalar_prefetch = 0 : i64, scratch_operands = 0 : i64, tpu.core_type = #tpu.core_type<tc>, window_params = [{transform_indices = @transform_0, window_bounds = array<i64: 1, 8, 64>}, {transform_indices = @transform_1, window_bounds = array<i64: 8, 64>}, {transform_indices = @transform_2, window_bounds = array<i64: 8, 64>}, {transform_indices = @transform_3, window_bounds = array<i64: 8, 32>}, {transform_indices = @transform_4, window_bounds = array<i64: 8, 32>}, {pipeline_mode = #tpu.pipeline_mode<synchronous>, transform_indices = @transform_5, window_bounds = array<i64: 1, 64>}, {pipeline_mode = #tpu.pipeline_mode<synchronous>, transform_indices = @transform_6, window_bounds = array<i64: 64, 64>}, {pipeline_mode = #tpu.pipeline_mode<synchronous>, transform_indices = @transform_7, window_bounds = array<i64: 64, 32>}, {pipeline_mode = #tpu.pipeline_mode<synchronous>, transform_indices = @transform_8, window_bounds = array<i64: 64, 32>}, {transform_indices = @transform_9, window_bounds = array<i64: 1, 8, 64>}, {transform_indices = @transform_10, window_bounds = array<i64: 1, 8, 32>}, {transform_indices = @transform_11, window_bounds = array<i64: 1, 8, 32>}]} {
    %c0 = arith.constant 0 : index
    %c0_0 = arith.constant 0 : index
    %c0_1 = arith.constant 0 : index
    %0 = vector.load %arg2[%c0, %c0_0, %c0_1] : memref<1x8x64xf32, #tpu.memory_space<vmem>>, vector<1x8x64xf32>
    %1 = vector.shape_cast %0 : vector<1x8x64xf32> to vector<8x64xf32>
    %c0_2 = arith.constant 0 : index
    %c0_3 = arith.constant 0 : index
    %2 = vector.load %arg7[%c0_2, %c0_3] : memref<1x64xf32, #tpu.memory_space<vmem>>, vector<1x64xf32>
    %3 = arith.mulf %1, %1 : vector<8x64xf32>
    %cst = arith.constant dense<0.000000e+00> : vector<8xf32>
    %4 = vector.multi_reduction <add>, %3, %cst [1] : vector<8x64xf32> to vector<8xf32>
    %5 = vector.shape_cast %4 : vector<8xf32> to vector<8x1xf32>
    %cst_4 = arith.constant 6.400000e+01 : f32
    %6 = vector.broadcast %cst_4 : f32 to vector<8x1xf32>
    %7 = arith.divf %5, %6 : vector<8x1xf32>
    %cst_5 = arith.constant 9.99999974E-6 : f32
    %8 = vector.broadcast %cst_5 : f32 to vector<8x1xf32>
    %9 = arith.addf %7, %8 : vector<8x1xf32>
    %10 = math.rsqrt %9 : vector<8x1xf32>
    %11 = vector.broadcast %10 : vector<8x1xf32> to vector<8x64xf32>
    %12 = arith.mulf %1, %11 : vector<8x64xf32>
    %13 = vector.broadcast %2 : vector<1x64xf32> to vector<8x64xf32>
    %14 = arith.mulf %12, %13 : vector<8x64xf32>
    %15 = arith.truncf %14 : vector<8x64xf32> to vector<8x64xbf16>
    %c0_6 = arith.constant 0 : index
    %c0_7 = arith.constant 0 : index
    %16 = vector.load %arg8[%c0_6, %c0_7] : memref<64x64xbf16, #tpu.memory_space<vmem>>, vector<64x64xbf16>
    %cst_8 = arith.constant dense<0.000000e+00> : vector<8x64xf32>
    %17 = tpu.matmul %15, %16, %cst_8 {dimension_numbers = #tpu.dot_dimension_numbers<[1], [0], [0], [1], [0, 0, 1, 1], [], []>} : vector<8x64xbf16>, vector<64x64xbf16>, vector<8x64xf32> -> vector<8x64xf32>
    %c0_9 = arith.constant 0 : index
    %c0_10 = arith.constant 0 : index
    %18 = vector.load %arg9[%c0_9, %c0_10] : memref<64x32xbf16, #tpu.memory_space<vmem>>, vector<64x32xbf16>
    %cst_11 = arith.constant dense<0.000000e+00> : vector<8x32xf32>
    %19 = tpu.matmul %15, %18, %cst_11 {dimension_numbers = #tpu.dot_dimension_numbers<[1], [0], [0], [1], [0, 0, 1, 1], [], []>} : vector<8x64xbf16>, vector<64x32xbf16>, vector<8x32xf32> -> vector<8x32xf32>
    %c0_12 = arith.constant 0 : index
    %c0_13 = arith.constant 0 : index
    %20 = vector.load %arg10[%c0_12, %c0_13] : memref<64x32xbf16, #tpu.memory_space<vmem>>, vector<64x32xbf16>
    %cst_14 = arith.constant dense<0.000000e+00> : vector<8x32xf32>
    %21 = tpu.matmul %15, %20, %cst_14 {dimension_numbers = #tpu.dot_dimension_numbers<[1], [0], [0], [1], [0, 0, 1, 1], [], []>} : vector<8x64xbf16>, vector<64x32xbf16>, vector<8x32xf32> -> vector<8x32xf32>
    %c0_15 = arith.constant 0 : index
    %c0_16 = arith.constant 0 : index
    %22 = vector.load %arg3[%c0_15, %c0_16] : memref<8x64xf32, #tpu.memory_space<vmem>>, vector<8x64xf32>
    %23 = arith.mulf %17, %22 : vector<8x64xf32>
    %24 = vector.extract_strided_slice %17 {offsets = [0, 32], sizes = [8, 32], strides = [1, 1]} : vector<8x64xf32> to vector<8x32xf32>
    %25 = vector.extract_strided_slice %17 {offsets = [0, 0], sizes = [8, 32], strides = [1, 1]} : vector<8x64xf32> to vector<8x32xf32>
    %26 = tpu.concatenate %24, %25 in 1 : vector<8x32xf32>, vector<8x32xf32> -> vector<8x64xf32>
    %c0_17 = arith.constant 0 : index
    %c0_18 = arith.constant 0 : index
    %27 = vector.load %arg4[%c0_17, %c0_18] : memref<8x64xf32, #tpu.memory_space<vmem>>, vector<8x64xf32>
    %28 = arith.mulf %26, %27 : vector<8x64xf32>
    %29 = arith.addf %23, %28 : vector<8x64xf32>
    %c0_19 = arith.constant 0 : index
    %c0_20 = arith.constant 0 : index
    %30 = vector.load %arg5[%c0_19, %c0_20] : memref<8x32xf32, #tpu.memory_space<vmem>>, vector<8x32xf32>
    %31 = arith.mulf %19, %30 : vector<8x32xf32>
    %32 = vector.extract_strided_slice %19 {offsets = [0, 16], sizes = [8, 16], strides = [1, 1]} : vector<8x32xf32> to vector<8x16xf32>
    %33 = vector.extract_strided_slice %19 {offsets = [0, 0], sizes = [8, 16], strides = [1, 1]} : vector<8x32xf32> to vector<8x16xf32>
    %34 = tpu.concatenate %32, %33 in 1 : vector<8x16xf32>, vector<8x16xf32> -> vector<8x32xf32>
    %c0_21 = arith.constant 0 : index
    %c0_22 = arith.constant 0 : index
    %35 = vector.load %arg6[%c0_21, %c0_22] : memref<8x32xf32, #tpu.memory_space<vmem>>, vector<8x32xf32>
    %36 = arith.mulf %34, %35 : vector<8x32xf32>
    %37 = arith.addf %31, %36 : vector<8x32xf32>
    %38 = arith.truncf %29 : vector<8x64xf32> to vector<8x64xbf16>
    %c0_23 = arith.constant 0 : index
    %c0_24 = arith.constant 0 : index
    %c0_25 = arith.constant 0 : index
    %39 = vector.load %arg11[%c0_23, %c0_24, %c0_25] : memref<1x8x64xbf16, #tpu.memory_space<vmem>>, vector<1x8x64xbf16>
    %40 = vector.shape_cast %39 : vector<1x8x64xbf16> to vector<8x64xbf16>
    %41 = vector.shape_cast %38 : vector<8x64xbf16> to vector<1x8x64xbf16>
    tpu.vector_store %arg11[%c0_23, %c0_24, %c0_25], %41 {strides = array<i32>} : memref<1x8x64xbf16, #tpu.memory_space<vmem>>, vector<1x8x64xbf16>,
    %42 = arith.truncf %37 : vector<8x32xf32> to vector<8x32xbf16>
    %c0_26 = arith.constant 0 : index
    %c0_27 = arith.constant 0 : index
    %c0_28 = arith.constant 0 : index
    %43 = vector.load %arg12[%c0_26, %c0_27, %c0_28] : memref<1x8x32xbf16, #tpu.memory_space<vmem>>, vector<1x8x32xbf16>
    %44 = vector.shape_cast %43 : vector<1x8x32xbf16> to vector<8x32xbf16>
    %45 = vector.shape_cast %42 : vector<8x32xbf16> to vector<1x8x32xbf16>
    tpu.vector_store %arg12[%c0_26, %c0_27, %c0_28], %45 {strides = array<i32>} : memref<1x8x32xbf16, #tpu.memory_space<vmem>>, vector<1x8x32xbf16>,
    %46 = arith.truncf %21 : vector<8x32xf32> to vector<8x32xbf16>
    %c0_29 = arith.constant 0 : index
    %c0_30 = arith.constant 0 : index
    %c0_31 = arith.constant 0 : index
    %47 = vector.load %arg13[%c0_29, %c0_30, %c0_31] : memref<1x8x32xbf16, #tpu.memory_space<vmem>>, vector<1x8x32xbf16>
    %48 = vector.shape_cast %47 : vector<1x8x32xbf16> to vector<8x32xbf16>
    %49 = vector.shape_cast %46 : vector<8x32xbf16> to vector<1x8x32xbf16>
    tpu.vector_store %arg13[%c0_29, %c0_30, %c0_31], %49 {strides = array<i32>} : memref<1x8x32xbf16, #tpu.memory_space<vmem>>, vector<1x8x32xbf16>,
    return
  }
  func.func @transform_0(%arg0: i32, %arg1: i32) -> (i32, i32, i32) {
    %c0_i32 = arith.constant 0 : i32
    %c0_i32_0 = arith.constant 0 : i32
    return %arg0, %arg1, %c0_i32 : i32, i32, i32
  }
  func.func @transform_1(%arg0: i32, %arg1: i32) -> (i32, i32) {
    %c0_i32 = arith.constant 0 : i32
    %c0_i32_0 = arith.constant 0 : i32
    return %arg1, %c0_i32 : i32, i32
  }
  func.func @transform_2(%arg0: i32, %arg1: i32) -> (i32, i32) {
    %c0_i32 = arith.constant 0 : i32
    %c0_i32_0 = arith.constant 0 : i32
    return %arg1, %c0_i32 : i32, i32
  }
  func.func @transform_3(%arg0: i32, %arg1: i32) -> (i32, i32) {
    %c0_i32 = arith.constant 0 : i32
    %c0_i32_0 = arith.constant 0 : i32
    return %arg1, %c0_i32 : i32, i32
  }
  func.func @transform_4(%arg0: i32, %arg1: i32) -> (i32, i32) {
    %c0_i32 = arith.constant 0 : i32
    %c0_i32_0 = arith.constant 0 : i32
    return %arg1, %c0_i32 : i32, i32
  }
  func.func @transform_5(%arg0: i32, %arg1: i32) -> (i32, i32) {
    %c0_i32 = arith.constant 0 : i32
    %c0_i32_0 = arith.constant 0 : i32
    %c0_i32_1 = arith.constant 0 : i32
    return %c0_i32, %c0_i32_0 : i32, i32
  }
  func.func @transform_6(%arg0: i32, %arg1: i32) -> (i32, i32) {
    %c0_i32 = arith.constant 0 : i32
    %c0_i32_0 = arith.constant 0 : i32
    %c0_i32_1 = arith.constant 0 : i32
    return %c0_i32, %c0_i32_0 : i32, i32
  }
  func.func @transform_7(%arg0: i32, %arg1: i32) -> (i32, i32) {
    %c0_i32 = arith.constant 0 : i32
    %c0_i32_0 = arith.constant 0 : i32
    %c0_i32_1 = arith.constant 0 : i32
    return %c0_i32, %c0_i32_0 : i32, i32
  }
  func.func @transform_8(%arg0: i32, %arg1: i32) -> (i32, i32) {
    %c0_i32 = arith.constant 0 : i32
    %c0_i32_0 = arith.constant 0 : i32
    %c0_i32_1 = arith.constant 0 : i32
    return %c0_i32, %c0_i32_0 : i32, i32
  }
  func.func @transform_9(%arg0: i32, %arg1: i32) -> (i32, i32, i32) {
    %c0_i32 = arith.constant 0 : i32
    %c0_i32_0 = arith.constant 0 : i32
    return %arg0, %arg1, %c0_i32 : i32, i32, i32
  }
  func.func @transform_10(%arg0: i32, %arg1: i32) -> (i32, i32, i32) {
    %c0_i32 = arith.constant 0 : i32
    %c0_i32_0 = arith.constant 0 : i32
    return %arg0, %arg1, %c0_i32 : i32, i32, i32
  }
  func.func @transform_11(%arg0: i32, %arg1: i32) -> (i32, i32, i32) {
    %c0_i32 = arith.constant 0 : i32
    %c0_i32_0 = arith.constant 0 : i32
    return %arg0, %arg1, %c0_i32 : i32, i32, i32
  }
}

</mosaic_0001>

<llo_original>
// kernel: tpu_custom_call.1
$region0: #{tpu_custom_call.1}
  #allocation0 [shape = 'u32[]', space=smem, size = 0x4, offset = 0x4, fixed_abs, tag = 'smem constant byte address 0x4 - core index']
  #allocation1 [shape = 'u32[72,128]{1,0:T(1,128)}', space=vmem, size = 0x9000, scoped, tag = 'internal scratch']
  %s0 = inlined_call_operand.vmem [shape: f32[2,8,64], index: 0, kind: input, shape index: {}]
  %s1 = inlined_call_operand.vmem [shape: f32[8,64], index: 1, kind: input, shape index: {}]
  %s2 = inlined_call_operand.vmem [shape: f32[8,64], index: 2, kind: input, shape index: {}]
  %s3 = inlined_call_operand.vmem [shape: f32[8,32], index: 3, kind: input, shape index: {}]
  %s4 = inlined_call_operand.vmem [shape: f32[8,32], index: 4, kind: input, shape index: {}]
  %s5 = inlined_call_operand.vmem [shape: f32[1,64], index: 5, kind: input, shape index: {}]
  %s6 = inlined_call_operand.vmem [shape: bf16[64,64], index: 6, kind: input, shape index: {}]
  %s7 = inlined_call_operand.vmem [shape: bf16[64,32], index: 7, kind: input, shape index: {}]
  %s8 = inlined_call_operand.vmem [shape: bf16[64,32], index: 8, kind: input, shape index: {}]
  %s9 = inlined_call_operand.hbm [shape: bf16[2,8,64], index: 9, kind: output, shape index: {0}]
  %s10 = inlined_call_operand.hbm [shape: bf16[2,8,32], index: 10, kind: output, shape index: {1}]
  %s11 = inlined_call_operand.hbm [shape: bf16[2,8,32], index: 11, kind: output, shape index: {2}]
  %12 = xla_tuple %s9, %s10, %s11
  %s13 = sld [smem:[#allocation0]]
  $region85: #{tpu_custom_call.1} parent=0
    _
  %s15 = ssub.s32 1, %s13
  %s16 = scalar_select 0, %s15, %s13
  $region1: #{tpu_custom_call.1} parent=0
    #allocation2 [shape = 'u8[4096]{0}', space=vmem, size = 0x1000, scoped, tag = 'output window, operand 0']
    #allocation3 [shape = 's32[2]{0}', space=sflag, size = 0x8, scoped, tag = 'scoped memory for tpu_custom_call.1']
    #allocation4 [shape = 'u8[4096]{0}', space=vmem, size = 0x1000, scoped, tag = 'output window, operand 1']
    #allocation5 [shape = 's32[2]{0}', space=sflag, size = 0x8, scoped, tag = 'scoped memory for tpu_custom_call.1']
    #allocation6 [shape = 'u8[4096]{0}', space=vmem, size = 0x1000, scoped, tag = 'output window, operand 2']
    %17 = vsyncpa [#allocation3], 0
    %s18 = scalar_lea.sflag [#allocation3], 1
    %19 = vsyncpa %s18, 0
    %20 = vsyncpa [#allocation5], 0
    %s21 = scalar_lea.sflag [#allocation5], 1
    %22 = vsyncpa %s21, 0
    loop: start=0, step=1, limit=4
    $region2: #{tpu_custom_call.1} parent=1 // loop_pre_header
      _
    $region3: #{tpu_custom_call.1} parent=1 // loop_header
      %s24 = sphi 0, %s28
      %p25 = scmp.ge.s32.totalorder %s24, 4
      %s31 = sphi 0, %s43
      %s32 = sphi 0, %s39
      %s33 = sphi 0, %s31
      %s34 = sphi 0, %s32
      %s35 = sphi 0, %s33
      %s36 = sphi 0, %s34
      %s48 = sphi 0, %s50
      %s51 = sphi 0, %s48
      %s52 = sphi 0, %s51
      %s68 = sphi 0, %s52
      %s74 = sphi 0, %s76
      %s77 = sphi 0, %s74
      %s78 = sphi 0, %s77
      %s94 = sphi 0, %s78
      %s100 = sphi 0, %s102
      %s103 = sphi 0, %s100
      %s104 = sphi 0, %s103
      %s120 = sphi 0, %s104
      %s126 = sphi 0, %s128
      %s129 = sphi 0, %s126
      %s130 = sphi 0, %s129
      %s146 = sphi 0, %s130
      %s152 = sphi 0, %s154
      %s155 = sphi 0, %s152
      %s156 = sphi 0, %s155
      %s172 = sphi 0, %s156
      %s176 = sphi 0, %s176
      %s178 = sphi 0, %s176
      %s179 = sphi 0, %s178
      %s193 = sphi 0, %s179
      %s197 = sphi 0, %s197
      %s199 = sphi 0, %s197
      %s200 = sphi 0, %s199
      %s214 = sphi 0, %s200
      %s218 = sphi 0, %s218
      %s220 = sphi 0, %s218
      %s221 = sphi 0, %s220
      %s235 = sphi 0, %s221
      %s239 = sphi 0, %s239
      %s241 = sphi 0, %s239
      %s242 = sphi 0, %s241
      %s256 = sphi 0, %s242
      %s264 = sphi 0, %s266
      %s267 = sphi 0, %s264
      %s268 = sphi 0, %s267
      %s284 = sphi 0, %s268
      %s292 = sphi 0, %s294
      %s295 = sphi 0, %s292
      %s296 = sphi 0, %s295
      %s312 = sphi 0, %s296
      %s320 = sphi 0, %s322
      %s323 = sphi 0, %s320
      %s324 = sphi 0, %s323
      %s340 = sphi 0, %s324
    $region4: #{tpu_custom_call.1} parent=1 // loop_header_branch
      %27 = sbr.rel (%p25) target = $region8
    $region5: #{tpu_custom_call.1} parent=1 // loop_body
      %s29 = ssub.s32 %s24, 1
      %s30 = ssub.s32 %s24, 2
      %s37 = sadd.s32 1, %s32
      %p38 = scmp.ge.s32.totalorder %s37, 1
      %s39 = scalar_select %p38, 0, %s37
      %s40 = sadd.s32 1, %s31
      %s41 = scalar_select %p38, %s40, %s31
      %p42 = scmp.ge.s32.totalorder %s41, 2
      %s43 = scalar_select %p42, 0, %s41
      %s44 = ssub.s32 %s31, %s43
      %s45 = ssub.s32 %s32, %s39
      %s46 = sor.u32 %s44, %s45
      %p47 = scmp.eq.s32.totalorder %s46, 0
      %s49 = sadd.s32 %s48, 1
      %s50 = scalar_select %p47, %s48, %s49
      %p53 = pneg %p47
      %p54 = scmp.eq.s32.totalorder %s24, 1
      %p55 = por %p53, %p54
      %p56 = scmp.ne.s32.totalorder %s48, %s51
      %p57 = scmp.eq.s32.totalorder %s24, 0
      %p58 = por %p56, %p57
      %p59 = scmp.ne.s32.totalorder %s48, %s51
      %p60 = scmp.eq.s32.totalorder %s29, 1
      %p61 = por %p59, %p60
      %p62 = scmp.ne.s32.totalorder %s51, %s52
      %p63 = scmp.eq.s32.totalorder %s29, 0
      %p64 = por %p62, %p63
      %p65 = scmp.ne.s32.totalorder %s51, %s52
      %p66 = scmp.eq.s32.totalorder %s30, 1
      %p67 = por %p65, %p66
      %p69 = scmp.ne.s32.totalorder %s52, %s68
      %p70 = scmp.eq.s32.totalorder %s30, 0
      %p71 = por %p69, %p70
      %s72 = ssub.s32 %s32, %s39
      %p73 = scmp.eq.s32.totalorder %s72, 0
      %s75 = sadd.s32 %s74, 1
      %s76 = scalar_select %p73, %s74, %s75
      %p79 = pneg %p73
      %p80 = scmp.eq.s32.totalorder %s24, 1
      %p81 = por %p79, %p80
      %p82 = scmp.ne.s32.totalorder %s74, %s77
      %p83 = scmp.eq.s32.totalorder %s24, 0
      %p84 = por %p82, %p83
      %p85 = scmp.ne.s32.totalorder %s74, %s77
      %p86 = scmp.eq.s32.totalorder %s29, 1
      %p87 = por %p85, %p86
      %p88 = scmp.ne.s32.totalorder %s77, %s78
      %p89 = scmp.eq.s32.totalorder %s29, 0
      %p90 = por %p88, %p89
      %p91 = scmp.ne.s32.totalorder %s77, %s78
      %p92 = scmp.eq.s32.totalorder %s30, 1
      %p93 = por %p91, %p92
      %p95 = scmp.ne.s32.totalorder %s78, %s94
      %p96 = scmp.eq.s32.totalorder %s30, 0
      %p97 = por %p95, %p96
      %s98 = ssub.s32 %s32, %s39
      %p99 = scmp.eq.s32.totalorder %s98, 0
      %s101 = sadd.s32 %s100, 1
      %s102 = scalar_select %p99, %s100, %s101
      %p105 = pneg %p99
      %p106 = scmp.eq.s32.totalorder %s24, 1
      %p107 = por %p105, %p106
      %p108 = scmp.ne.s32.totalorder %s100, %s103
      %p109 = scmp.eq.s32.totalorder %s24, 0
      %p110 = por %p108, %p109
      %p111 = scmp.ne.s32.totalorder %s100, %s103
      %p112 = scmp.eq.s32.totalorder %s29, 1
      %p113 = por %p111, %p112
      %p114 = scmp.ne.s32.totalorder %s103, %s104
      %p115 = scmp.eq.s32.totalorder %s29, 0
      %p116 = por %p114, %p115
      %p117 = scmp.ne.s32.totalorder %s103, %s104
      %p118 = scmp.eq.s32.totalorder %s30, 1
      %p119 = por %p117, %p118
      %p121 = scmp.ne.s32.totalorder %s104, %s120
      %p122 = scmp.eq.s32.totalorder %s30, 0
      %p123 = por %p121, %p122
      %s124 = ssub.s32 %s32, %s39
      %p125 = scmp.eq.s32.totalorder %s124, 0
      %s127 = sadd.s32 %s126, 1
      %s128 = scalar_select %p125, %s126, %s127
      %p131 = pneg %p125
      %p132 = scmp.eq.s32.totalorder %s24, 1
      %p133 = por %p131, %p132
      %p134 = scmp.ne.s32.totalorder %s126, %s129
      %p135 = scmp.eq.s32.totalorder %s24, 0
      %p136 = por %p134, %p135
      %p137 = scmp.ne.s32.totalorder %s126, %s129
      %p138 = scmp.eq.s32.totalorder %s29, 1
      %p139 = por %p137, %p138
      %p140 = scmp.ne.s32.totalorder %s129, %s130
      %p141 = scmp.eq.s32.totalorder %s29, 0
      %p142 = por %p140, %p141
      %p143 = scmp.ne.s32.totalorder %s129, %s130
      %p144 = scmp.eq.s32.totalorder %s30, 1
      %p145 = por %p143, %p144
      %p147 = scmp.ne.s32.totalorder %s130, %s146
      %p148 = scmp.eq.s32.totalorder %s30, 0
      %p149 = por %p147, %p148
      %s150 = ssub.s32 %s32, %s39
      %p151 = scmp.eq.s32.totalorder %s150, 0
      %s153 = sadd.s32 %s152, 1
      %s154 = scalar_select %p151, %s152, %s153
      %p157 = pneg %p151
      %p158 = scmp.eq.s32.totalorder %s24, 1
      %p159 = por %p157, %p158
      %p160 = scmp.ne.s32.totalorder %s152, %s155
      %p161 = scmp.eq.s32.totalorder %s24, 0
      %p162 = por %p160, %p161
      %p163 = scmp.ne.s32.totalorder %s152, %s155
      %p164 = scmp.eq.s32.totalorder %s29, 1
      %p165 = por %p163, %p164
      %p166 = scmp.ne.s32.totalorder %s155, %s156
      %p167 = scmp.eq.s32.totalorder %s29, 0
      %p168 = por %p166, %p167
      %p169 = scmp.ne.s32.totalorder %s155, %s156
      %p170 = scmp.eq.s32.totalorder %s30, 1
      %p171 = por %p169, %p170
      %p173 = scmp.ne.s32.totalorder %s156, %s172
      %p174 = scmp.eq.s32.totalorder %s30, 0
      %p175 = por %p173, %p174
      %s177 = sadd.s32 %s176, 1
      %p180 = scmp.eq.s32.totalorder %s24, 1
      %p181 = scmp.ne.s32.totalorder %s176, %s178
      %p182 = scmp.eq.s32.totalorder %s24, 0
      %p183 = por %p181, %p182
      %p184 = scmp.ne.s32.totalorder %s176, %s178
      %p185 = scmp.eq.s32.totalorder %s29, 1
      %p186 = por %p184, %p185
      %p187 = scmp.ne.s32.totalorder %s178, %s179
      %p188 = scmp.eq.s32.totalorder %s29, 0
      %p189 = por %p187, %p188
      %p190 = scmp.ne.s32.totalorder %s178, %s179
      %p191 = scmp.eq.s32.totalorder %s30, 1
      %p192 = por %p190, %p191
      %p194 = scmp.ne.s32.totalorder %s179, %s193
      %p195 = scmp.eq.s32.totalorder %s30, 0
      %p196 = por %p194, %p195
      %s198 = sadd.s32 %s197, 1
      %p201 = scmp.eq.s32.totalorder %s24, 1
      %p202 = scmp.ne.s32.totalorder %s197, %s199
      %p203 = scmp.eq.s32.totalorder %s24, 0
      %p204 = por %p202, %p203
      %p205 = scmp.ne.s32.totalorder %s197, %s199
      %p206 = scmp.eq.s32.totalorder %s29, 1
      %p207 = por %p205, %p206
      %p208 = scmp.ne.s32.totalorder %s199, %s200
      %p209 = scmp.eq.s32.totalorder %s29, 0
      %p210 = por %p208, %p209
      %p211 = scmp.ne.s32.totalorder %s199, %s200
      %p212 = scmp.eq.s32.totalorder %s30, 1
      %p213 = por %p211, %p212
      %p215 = scmp.ne.s32.totalorder %s200, %s214
      %p216 = scmp.eq.s32.totalorder %s30, 0
      %p217 = por %p215, %p216
      %s219 = sadd.s32 %s218, 1
      %p222 = scmp.eq.s32.totalorder %s24, 1
      %p223 = scmp.ne.s32.totalorder %s218, %s220
      %p224 = scmp.eq.s32.totalorder %s24, 0
      %p225 = por %p223, %p224
      %p226 = scmp.ne.s32.totalorder %s218, %s220
      %p227 = scmp.eq.s32.totalorder %s29, 1
      %p228 = por %p226, %p227
      %p229 = scmp.ne.s32.totalorder %s220, %s221
      %p230 = scmp.eq.s32.totalorder %s29, 0
      %p231 = por %p229, %p230
      %p232 = scmp.ne.s32.totalorder %s220, %s221
      %p233 = scmp.eq.s32.totalorder %s30, 1
      %p234 = por %p232, %p233
      %p236 = scmp.ne.s32.totalorder %s221, %s235
      %p237 = scmp.eq.s32.totalorder %s30, 0
      %p238 = por %p236, %p237
      %s240 = sadd.s32 %s239, 1
      %p243 = scmp.eq.s32.totalorder %s24, 1
      %p244 = scmp.ne.s32.totalorder %s239, %s241
      %p245 = scmp.eq.s32.totalorder %s24, 0
      %p246 = por %p244, %p245
      %p247 = scmp.ne.s32.totalorder %s239, %s241
      %p248 = scmp.eq.s32.totalorder %s29, 1
      %p249 = por %p247, %p248
      %p250 = scmp.ne.s32.totalorder %s241, %s242
      %p251 = scmp.eq.s32.totalorder %s29, 0
      %p252 = por %p250, %p251
      %p253 = scmp.ne.s32.totalorder %s241, %s242
      %p254 = scmp.eq.s32.totalorder %s30, 1
      %p255 = por %p253, %p254
      %p257 = scmp.ne.s32.totalorder %s242, %s256
      %p258 = scmp.eq.s32.totalorder %s30, 0
      %p259 = por %p257, %p258
      %s260 = ssub.s32 %s31, %s43
      %s261 = ssub.s32 %s32, %s39
      %s262 = sor.u32 %s260, %s261
      %p263 = scmp.eq.s32.totalorder %s262, 0
      %s265 = sadd.s32 %s264, 1
      %s266 = scalar_select %p263, %s264, %s265
      %p269 = pneg %p263
      %p270 = scmp.eq.s32.totalorder %s24, 1
      %p271 = por %p269, %p270
      %p272 = scmp.ne.s32.totalorder %s264, %s267
      %p273 = scmp.eq.s32.totalorder %s24, 0
      %p274 = por %p272, %p273
      %p275 = scmp.ne.s32.totalorder %s264, %s267
      %p276 = scmp.eq.s32.totalorder %s29, 1
      %p277 = por %p275, %p276
      %p278 = scmp.ne.s32.totalorder %s267, %s268
      %p279 = scmp.eq.s32.totalorder %s29, 0
      %p280 = por %p278, %p279
      %p281 = scmp.ne.s32.totalorder %s267, %s268
      %p282 = scmp.eq.s32.totalorder %s30, 1
      %p283 = por %p281, %p282
      %p285 = scmp.ne.s32.totalorder %s268, %s284
      %p286 = scmp.eq.s32.totalorder %s30, 0
      %p287 = por %p285, %p286
      %s288 = ssub.s32 %s31, %s43
      %s289 = ssub.s32 %s32, %s39
      %s290 = sor.u32 %s288, %s289
      %p291 = scmp.eq.s32.totalorder %s290, 0
      %s293 = sadd.s32 %s292, 1
      %s294 = scalar_select %p291, %s292, %s293
      %p297 = pneg %p291
      %p298 = scmp.eq.s32.totalorder %s24, 1
      %p299 = por %p297, %p298
      %p300 = scmp.ne.s32.totalorder %s292, %s295
      %p301 = scmp.eq.s32.totalorder %s24, 0
      %p302 = por %p300, %p301
      %p303 = scmp.ne.s32.totalorder %s292, %s295
      %p304 = scmp.eq.s32.totalorder %s29, 1
      %p305 = por %p303, %p304
      %p306 = scmp.ne.s32.totalorder %s295, %s296
      %p307 = scmp.eq.s32.totalorder %s29, 0
      %p308 = por %p306, %p307
      %p309 = scmp.ne.s32.totalorder %s295, %s296
      %p310 = scmp.eq.s32.totalorder %s30, 1
      %p311 = por %p309, %p310
      %p313 = scmp.ne.s32.totalorder %s296, %s312
      %p314 = scmp.eq.s32.totalorder %s30, 0
      %p315 = por %p313, %p314
      %s316 = ssub.s32 %s31, %s43
      %s317 = ssub.s32 %s32, %s39
      %s318 = sor.u32 %s316, %s317
      %p319 = scmp.eq.s32.totalorder %s318, 0
      %s321 = sadd.s32 %s320, 1
      %s322 = scalar_select %p319, %s320, %s321
      %p325 = pneg %p319
      %p326 = scmp.eq.s32.totalorder %s24, 1
      %p327 = por %p325, %p326
      %p328 = scmp.ne.s32.totalorder %s320, %s323
      %p329 = scmp.eq.s32.totalorder %s24, 0
      %p330 = por %p328, %p329
      %p331 = scmp.ne.s32.totalorder %s320, %s323
      %p332 = scmp.eq.s32.totalorder %s29, 1
      %p333 = por %p331, %p332
      %p334 = scmp.ne.s32.totalorder %s323, %s324
      %p335 = scmp.eq.s32.totalorder %s29, 0
      %p336 = por %p334, %p335
      %p337 = scmp.ne.s32.totalorder %s323, %s324
      %p338 = scmp.eq.s32.totalorder %s30, 1
      %p339 = por %p337, %p338
      %p341 = scmp.ne.s32.totalorder %s324, %s340
      %p342 = scmp.eq.s32.totalorder %s30, 0
      %p343 = por %p341, %p342
      %p344 = scmp.le.s32.totalorder 1, %s24
      %p345 = scmp.lt.s32.totalorder %s24, 3
      %p346 = pnand %p344, %p345
      %p347 = pneg %p346
      // Predicated region
      $region9: #{tpu_custom_call.1} parent=5 // pred_check
        _
      $region10: #{tpu_custom_call.1} parent=5 // pred_check_branch
        %349 = sbr.rel (%p346) target = $region12
      $region11: #{tpu_custom_call.1} parent=5 // pred_region
        %s350 = ssub.s32 %s24, 1
        // Predicated region
        $region13: #{tpu_custom_call.1} parent=11 // pred_check
          %p351 = pneg %p90
        $region14: #{tpu_custom_call.1} parent=11 // pred_check_branch
          %353 = sbr.rel (%p351) target = $region16
        $region15: #{tpu_custom_call.1} parent=11 // pred_region
          %p354 = scmp.lt.s32.totalorder %s34, 0
          %s355 = scalar_select %p354, %s34, 0
          %s356 = smul.addr %s355, 8
          %s357 = scalar_lea.vmem %s1, %s356
        $region16: #{tpu_custom_call.1} parent=11 // pred_fallthru
          _
        // Predicated region
        $region17: #{tpu_custom_call.1} parent=11 // pred_check
          %p358 = pneg %p116
        $region18: #{tpu_custom_call.1} parent=11 // pred_check_branch
          %360 = sbr.rel (%p358) target = $region20
        $region19: #{tpu_custom_call.1} parent=11 // pred_region
          %p361 = scmp.lt.s32.totalorder %s34, 0
          %s362 = scalar_select %p361, %s34, 0
          %s363 = smul.addr %s362, 8
          %s364 = scalar_lea.vmem %s2, %s363
        $region20: #{tpu_custom_call.1} parent=11 // pred_fallthru
          _
        // Predicated region
        $region21: #{tpu_custom_call.1} parent=11 // pred_check
          %p365 = pneg %p142
        $region22: #{tpu_custom_call.1} parent=11 // pred_check_branch
          %367 = sbr.rel (%p365) target = $region24
        $region23: #{tpu_custom_call.1} parent=11 // pred_region
          %p368 = scmp.lt.s32.totalorder %s34, 0
          %s369 = scalar_select %p368, %s34, 0
          %s370 = smul.addr %s369, 8
          %s371 = scalar_lea.vmem %s3, %s370
        $region24: #{tpu_custom_call.1} parent=11 // pred_fallthru
          _
        // Predicated region
        $region25: #{tpu_custom_call.1} parent=11 // pred_check
          %p372 = pneg %p168
        $region26: #{tpu_custom_call.1} parent=11 // pred_check_branch
          %374 = sbr.rel (%p372) target = $region28
        $region27: #{tpu_custom_call.1} parent=11 // pred_region
          %p375 = scmp.lt.s32.totalorder %s34, 0
          %s376 = scalar_select %p375, %s34, 0
          %s377 = smul.addr %s376, 8
          %s378 = scalar_lea.vmem %s4, %s377
        $region28: #{tpu_custom_call.1} parent=11 // pred_fallthru
          _
        // Predicated region
        $region29: #{tpu_custom_call.1} parent=11 // pred_check
          %p379 = pneg %p189
        $region30: #{tpu_custom_call.1} parent=11 // pred_check_branch
          %381 = sbr.rel (%p379) target = $region32
        $region31: #{tpu_custom_call.1} parent=11 // pred_region
          _
        $region32: #{tpu_custom_call.1} parent=11 // pred_fallthru
          _
        // Predicated region
        $region33: #{tpu_custom_call.1} parent=11 // pred_check
          %p382 = pneg %p210
        $region34: #{tpu_custom_call.1} parent=11 // pred_check_branch
          %384 = sbr.rel (%p382) target = $region36
        $region35: #{tpu_custom_call.1} parent=11 // pred_region
          _
        $region36: #{tpu_custom_call.1} parent=11 // pred_fallthru
          _
        // Predicated region
        $region37: #{tpu_custom_call.1} parent=11 // pred_check
          %p385 = pneg %p231
        $region38: #{tpu_custom_call.1} parent=11 // pred_check_branch
          %387 = sbr.rel (%p385) target = $region40
        $region39: #{tpu_custom_call.1} parent=11 // pred_region
          _
        $region40: #{tpu_custom_call.1} parent=11 // pred_fallthru
          _
        // Predicated region
        $region41: #{tpu_custom_call.1} parent=11 // pred_check
          %p388 = pneg %p252
        $region42: #{tpu_custom_call.1} parent=11 // pred_check_branch
          %390 = sbr.rel (%p388) target = $region44
        $region43: #{tpu_custom_call.1} parent=11 // pred_region
          _
        $region44: #{tpu_custom_call.1} parent=11 // pred_fallthru
          _
      $region12: #{tpu_custom_call.1} parent=5 // pred_fallthru
        _
      %p391 = scmp.lt.s32.totalorder %s24, 2
      // Predicated region
      $region45: #{tpu_custom_call.1} parent=5 // pred_check
        %p392 = pneg %p391
      $region46: #{tpu_custom_call.1} parent=5 // pred_check_branch
        %394 = sbr.rel (%p392) target = $region48
      $region47: #{tpu_custom_call.1} parent=5 // pred_region
        // Predicated region
        $region49: #{tpu_custom_call.1} parent=47 // pred_check
          %p395 = pneg %p58
        $region50: #{tpu_custom_call.1} parent=47 // pred_check_branch
          %397 = sbr.rel (%p395) target = $region52
        $region51: #{tpu_custom_call.1} parent=47 // pred_region
          %p398 = scmp.lt.s32.totalorder %s31, 1
          %s399 = scalar_select %p398, %s31, 1
          %p400 = scmp.lt.s32.totalorder %s32, 0
          %s401 = scalar_select %p400, %s32, 0
          %s402 = sadd.s32 %s401, %s399
          %s403 = smul.addr %s402, 8
          %s404 = scalar_lea.vmem %s0, %s403
        $region52: #{tpu_custom_call.1} parent=47 // pred_fallthru
          _
      $region48: #{tpu_custom_call.1} parent=5 // pred_fallthru
        _
      %p405 = scmp.le.s32.totalorder 1, %s24
      %p406 = scmp.lt.s32.totalorder %s24, 3
      %p407 = pnand %p405, %p406
      %p408 = pneg %p407
      // Predicated region
      $region53: #{tpu_custom_call.1} parent=5 // pred_check
        _
      $region54: #{tpu_custom_call.1} parent=5 // pred_check_branch
        %410 = sbr.rel (%p407) target = $region56
      $region55: #{tpu_custom_call.1} parent=5 // pred_region
        %s411 = ssub.s32 %s24, 1
        %p412 = scmp.lt.s32.totalorder %s33, 1
        %s413 = scalar_select %p412, %s33, 1
        %p414 = scmp.lt.s32.totalorder %s34, 0
        %s415 = scalar_select %p414, %s34, 0
        %s416 = sadd.s32 %s415, %s413
        %s417 = smul.addr %s416, 8
        %s418 = scalar_lea.vmem %s0, %s417
        %p419 = pneg %p64
        %p420 = pneg %p61
        %p421 = scmp.lt.s32.totalorder %s34, 0
        %s422 = scalar_select %p421, %s34, 0
        %s423 = smul.addr %s422, 8
        %s424 = scalar_lea.vmem %s1, %s423
        %p425 = pneg %p90
        %p426 = pneg %p87
        %p427 = scmp.lt.s32.totalorder %s34, 0
        %s428 = scalar_select %p427, %s34, 0
        %s429 = smul.addr %s428, 8
        %s430 = scalar_lea.vmem %s2, %s429
        %p431 = pneg %p116
        %p432 = pneg %p113
        %p433 = scmp.lt.s32.totalorder %s34, 0
        %s434 = scalar_select %p433, %s34, 0
        %s435 = smul.addr %s434, 8
        %s436 = scalar_lea.vmem %s3, %s435
        %p437 = pneg %p142
        %p438 = pneg %p139
        %p439 = scmp.lt.s32.totalorder %s34, 0
        %s440 = scalar_select %p439, %s34, 0
        %s441 = smul.addr %s440, 8
        %s442 = scalar_lea.vmem %s4, %s441
        %p443 = pneg %p168
        %p444 = pneg %p165
        %p445 = pneg %p189
        %p446 = pneg %p186
        %p447 = pneg %p210
        %p448 = pneg %p207
        %p449 = pneg %p231
        %p450 = pneg %p228
        %p451 = pneg %p252
        %p452 = pneg %p249
        %p453 = pneg %p280
        %p454 = pneg %p277
        %s455 = sand.u32 %s267, 1
        %s456 = scalar_lea.sflag [#allocation3], %s455
        %s457 = sand.u32 %s267, 1
        %s458 = smul.addr %s457, 4
        %s459 = scalar_lea.vmem [#allocation2], %s458
        %p460 = pneg %p308
        %p461 = pneg %p305
        %s462 = sand.u32 %s29, 1
        %s463 = scalar_lea.sflag [#allocation5], %s462
        %s464 = sand.u32 %s295, 1
        %s465 = smul.addr %s464, 4
        %s466 = scalar_lea.vmem [#allocation4], %s465
        %p467 = pneg %p336
        %p468 = pneg %p333
        %s469 = sand.u32 %s29, 1
        %s470 = scalar_lea.sflag [#allocation5], %s469
        %s471 = sand.u32 %s323, 1
        %s472 = smul.addr %s471, 4
        %s473 = scalar_lea.vmem [#allocation6], %s472
        %p474 = scmp.lt.s32.totalorder %s33, 1
        %s475 = scalar_select %p474, %s33, 1
        %p476 = scmp.lt.s32.totalorder %s34, 0
        %s477 = scalar_select %p476, %s34, 0
        %s478 = sadd.s32 %s477, %s475
        %s479 = smul.addr %s478, 8
        %s480 = scalar_lea.vmem %s0, %s479
        %p481 = scmp.lt.s32.totalorder %s34, 0
        %s482 = scalar_select %p481, %s34, 0
        %s483 = smul.addr %s482, 8
        %s484 = scalar_lea.vmem %s1, %s483
        %p485 = scmp.lt.s32.totalorder %s34, 0
        %s486 = scalar_select %p485, %s34, 0
        %s487 = smul.addr %s486, 8
        %s488 = scalar_lea.vmem %s2, %s487
        %p489 = scmp.lt.s32.totalorder %s34, 0
        %s490 = scalar_select %p489, %s34, 0
        %s491 = smul.addr %s490, 8
        %s492 = scalar_lea.vmem %s3, %s491
        %p493 = scmp.lt.s32.totalorder %s34, 0
        %s494 = scalar_select %p493, %s34, 0
        %s495 = smul.addr %s494, 8
        %s496 = scalar_lea.vmem %s4, %s495
        %v498 = vld [vmem:[%s480] sm:$0xff]
        %v499 = vld [vmem:[%s5] sm:$0x1]
        %v500 = vmul.f32 %v498, %v498
        %vm501 = vcmask 523264
        %v502 = vsel %vm501, %v500, 0.0
        %503 = vadd.xlane.f32.xlu0 %v502
        %v504 = vpop.xlane.xlu0 %503
        %v505 = vrcp.pop 64.0
        %v506 = vmul.f32 64.0, %v505
        %v507 = vsub.f32 1.0, %v506
        %v508 = vmul.f32 %v505, %v507
        %v509 = vadd.f32 %v505, %v508
        %vm510 = vweird.f32 %v505
        %v511 = vsel %vm510, %v505, %v509
        %v512 = vmul.f32 %v504, %v511
        %v513 = vadd.f32 %v512, 1e-05
        %v514 = vrsqrt.pop %v513
        %v515 = vmul.f32 %v514, %v513
        %v516 = vmul.f32 %v515, %v514
        %v517 = vmul.f32 0.5, %v516
        %v518 = vsub.f32 1.5, %v517
        %v519 = vmul.f32 %v514, %v518
        %vm520 = vweird.f32 %v513
        %vm521 = vweird.f32 %v514
        %vm522 = vmor %vm520, %vm521
        %v523 = vsel %vm522, %v514, %v519
        %v524 = vmul.f32 %v498, %v523
        %v526 = vperm.slane %v499, 0
        %v528 = vmul.f32 %v524, %v526
        %v529 = vpack.c.bf16 %v528, %v528
        %v530 = vld [vmem:[%s6] sm:$0xf]
        %v531 = vld [vmem:[%s6 + $0x4] sm:$0xf]
        %v532 = vld [vmem:[%s6 + $0x8] sm:$0xf]
        %v533 = vld [vmem:[%s6 + $0xc] sm:$0xf]
        %v534 = vld [vmem:[%s6 + $0x10] sm:$0xf]
        %v535 = vld [vmem:[%s6 + $0x14] sm:$0xf]
        %v536 = vld [vmem:[%s6 + $0x18] sm:$0xf]
        %v537 = vld [vmem:[%s6 + $0x1c] sm:$0xf]
        %v546 = vunpack.c.l.b16 %v530
        %v547 = vunpack.c.l.b16 %v531
        %v548 = vunpack.c.l.b16 %v532
        %v549 = vunpack.c.l.b16 %v533
        %v550 = vunpack.c.l.b16 %v534
        %v551 = vunpack.c.l.b16 %v535
        %v552 = vunpack.c.l.b16 %v536
        %v553 = vunpack.c.l.b16 %v537
        %v554 = vpack.c.b16 %v547, %v546
        %v555 = vpack.c.b16 %v549, %v548
        %v556 = vpack.c.b16 %v551, %v550
        %v557 = vpack.c.b16 %v553, %v552
        %v563 = vsel %vm501, %v529, 0
        %565 = vmatpush.bf16.msra.mxu0 0
        %566 = vmatpush.bf16.msra.mxu0 0
        %567 = vmatpush.bf16.msra.mxu0 0
        %568 = vmatpush.bf16.msra.mxu0 0
        %569 = vmatpush.bf16.msra.mxu0 %v557
        %570 = vmatpush.bf16.msra.mxu0 %v556
        %571 = vmatpush.bf16.msra.mxu0 %v555
        %572 = vmatpush.bf16.msra.mxu0 %v554
        %573 = vmatmul.bf16.gmra.mxu0 %v563
        %v574 = vpop.f32.mrf.mxu0
        %v575 = vadd.f32 0.0, %v574
        %v576 = vpop.f32.mrf.mxu0
        %577 = vdwg.mxu0
        %v578 = vld [vmem:[%s7] sm:$0xf]
        %v579 = vld [vmem:[%s7 + $0x4] sm:$0xf]
        %v580 = vld [vmem:[%s7 + $0x8] sm:$0xf]
        %v581 = vld [vmem:[%s7 + $0xc] sm:$0xf]
        %v582 = vld [vmem:[%s7 + $0x10] sm:$0xf]
        %v583 = vld [vmem:[%s7 + $0x14] sm:$0xf]
        %v584 = vld [vmem:[%s7 + $0x18] sm:$0xf]
        %v585 = vld [vmem:[%s7 + $0x1c] sm:$0xf]
        %v594 = vunpack.c.l.b16 %v578
        %v595 = vunpack.c.l.b16 %v579
        %v596 = vunpack.c.l.b16 %v580
        %v597 = vunpack.c.l.b16 %v581
        %v598 = vunpack.c.l.b16 %v582
        %v599 = vunpack.c.l.b16 %v583
        %v600 = vunpack.c.l.b16 %v584
        %v601 = vunpack.c.l.b16 %v585
        %v602 = vpack.c.b16 %v595, %v594
        %v603 = vpack.c.b16 %v597, %v596
        %v604 = vpack.c.b16 %v599, %v598
        %v605 = vpack.c.b16 %v601, %v600
        %610 = vmatpush.bf16.msra.mxu0 0
        %611 = vmatpush.bf16.msra.mxu0 0
        %612 = vmatpush.bf16.msra.mxu0 0
        %613 = vmatpush.bf16.msra.mxu0 0
        %614 = vmatpush.bf16.msra.mxu0 %v605
        %615 = vmatpush.bf16.msra.mxu0 %v604
        %616 = vmatpush.bf16.msra.mxu0 %v603
        %617 = vmatpush.bf16.msra.mxu0 %v602
        %618 = vmatmul.bf16.gmra.mxu0 %v563
        %v619 = vpop.f32.mrf.mxu0
        %v620 = vadd.f32 0.0, %v619
        %v621 = vpop.f32.mrf.mxu0
        %622 = vdwg.mxu0
        %v623 = vld [vmem:[%s8] sm:$0xf]
        %v624 = vld [vmem:[%s8 + $0x4] sm:$0xf]
        %v625 = vld [vmem:[%s8 + $0x8] sm:$0xf]
        %v626 = vld [vmem:[%s8 + $0xc] sm:$0xf]
        %v627 = vld [vmem:[%s8 + $0x10] sm:$0xf]
        %v628 = vld [vmem:[%s8 + $0x14] sm:$0xf]
        %v629 = vld [vmem:[%s8 + $0x18] sm:$0xf]
        %v630 = vld [vmem:[%s8 + $0x1c] sm:$0xf]
        %v639 = vunpack.c.l.b16 %v623
        %v640 = vunpack.c.l.b16 %v624
        %v641 = vunpack.c.l.b16 %v625
        %v642 = vunpack.c.l.b16 %v626
        %v643 = vunpack.c.l.b16 %v627
        %v644 = vunpack.c.l.b16 %v628
        %v645 = vunpack.c.l.b16 %v629
        %v646 = vunpack.c.l.b16 %v630
        %v647 = vpack.c.b16 %v640, %v639
        %v648 = vpack.c.b16 %v642, %v641
        %v649 = vpack.c.b16 %v644, %v643
        %v650 = vpack.c.b16 %v646, %v645
        %655 = vmatpush.bf16.msra.mxu0 0
        %656 = vmatpush.bf16.msra.mxu0 0
        %657 = vmatpush.bf16.msra.mxu0 0
        %658 = vmatpush.bf16.msra.mxu0 0
        %659 = vmatpush.bf16.msra.mxu0 %v650
        %660 = vmatpush.bf16.msra.mxu0 %v649
        %661 = vmatpush.bf16.msra.mxu0 %v648
        %662 = vmatpush.bf16.msra.mxu0 %v647
        %663 = vmatmul.bf16.gmra.mxu0 %v563
        %v664 = vpop.f32.mrf.mxu0
        %v665 = vadd.f32 0.0, %v664
        %v666 = vpop.f32.mrf.mxu0
        %667 = vdwg.mxu0
        %v668 = vld [vmem:[%s484] sm:$0xff]
        %v669 = vmul.f32 %v575, %v668
        %671 = vrot.lane.b32.xlu0 %v575, 96
        %v672 = vpop.permute.xlu0 %671
        %674 = vrot.lane.b32.xlu0 %v575, 32
        %v675 = vpop.permute.xlu0 %674
        %vm677 = vcmask 261120
        %v678 = vsel %vm677, %v672, %v675
        %v679 = vld [vmem:[%s488] sm:$0xff]
        %v680 = vmul.f32 %v678, %v679
        %v681 = vadd.f32 %v669, %v680
        %v682 = vld [vmem:[%s492] sm:$0xff]
        %v683 = vmul.f32 %v620, %v682
        %685 = vrot.lane.b32.xlu0 %v620, 112
        %v686 = vpop.permute.xlu0 %685
        %688 = vrot.lane.b32.xlu0 %v620, 16
        %v689 = vpop.permute.xlu0 %688
        %vm691 = vcmask 130048
        %v692 = vsel %vm691, %v686, %v689
        %v693 = vld [vmem:[%s496] sm:$0xff]
        %v694 = vmul.f32 %v692, %v693
        %v695 = vadd.f32 %v683, %v694
        %v696 = vpack.c.bf16 %v681, %v681
        %vm697 = vcmask 519168
        %698 = vst.msk [vmem:[%s459] sm:$0xf] %vm697, %v696
        %v699 = vpack.c.bf16 %v695, %v695
        %vm700 = vcmask 257024
        %701 = vst.msk [vmem:[%s466] sm:$0xf] %vm700, %v699
        %v702 = vpack.c.bf16 %v665, %v665
        %703 = vst.msk [vmem:[%s473] sm:$0xf] %vm700, %v702
        %s704 = sand.u32 %s267, 1
        %s705 = scalar_lea.sflag [#allocation3], %s704
        %s706 = sand.u32 %s267, 1
        %s707 = smul.addr %s706, 4
        %s708 = scalar_lea.vmem [#allocation2], %s707
        %s709 = sand.u32 %s29, 1
        %s710 = scalar_lea.sflag [#allocation5], %s709
        %s711 = sand.u32 %s295, 1
        %s712 = smul.addr %s711, 4
        %s713 = scalar_lea.vmem [#allocation4], %s712
        %s714 = sand.u32 %s29, 1
        %s715 = scalar_lea.sflag [#allocation5], %s714
        %s716 = sand.u32 %s323, 1
        %s717 = smul.addr %s716, 4
        %s718 = scalar_lea.vmem [#allocation6], %s717
        // Predicated region
        $region57: #{tpu_custom_call.1} parent=55 // pred_check
          %p719 = pneg %p277
        $region58: #{tpu_custom_call.1} parent=55 // pred_check_branch
          %721 = sbr.rel (%p719) target = $region60
        $region59: #{tpu_custom_call.1} parent=55 // pred_region
          %723 = vsyncadd %s705, 0
          %s724 = sadd.s32 %s34, %s33
          %s725 = smul.addr %s724, 4
          %s726 = scalar_lea.hbm %s9, %s725
          %s728 = sshll.u32 %s708, 4
          %s729 = int_to_ptr.vmem [resolvable:$true] %s728
          %s730 = sshll.u32 %s726, 4
          %s731 = int_to_ptr.hbm [resolvable:$true] %s730
          %733 = dma.vmem_to_hbm [thread:$0]  %s729, 64, %s731, %s705
        $region60: #{tpu_custom_call.1} parent=55 // pred_fallthru
          _
        // Predicated region
        $region61: #{tpu_custom_call.1} parent=55 // pred_check
          %p734 = pneg %p305
        $region62: #{tpu_custom_call.1} parent=55 // pred_check_branch
          %736 = sbr.rel (%p734) target = $region64
        $region63: #{tpu_custom_call.1} parent=55 // pred_region
          %738 = vsyncadd %s710, 0
          %s739 = sadd.s32 %s34, %s33
          %s740 = smul.addr %s739, 4
          %s741 = scalar_lea.hbm %s10, %s740
          %s743 = sshll.u32 %s713, 4
          %s744 = int_to_ptr.vmem [resolvable:$true] %s743
          %s745 = sshll.u32 %s741, 4
          %s746 = int_to_ptr.hbm [resolvable:$true] %s745
          %748 = dma.vmem_to_hbm [thread:$0]  %s744, 64, %s746, %s710
        $region64: #{tpu_custom_call.1} parent=55 // pred_fallthru
          _
        // Predicated region
        $region65: #{tpu_custom_call.1} parent=55 // pred_check
          %p749 = pneg %p333
        $region66: #{tpu_custom_call.1} parent=55 // pred_check_branch
          %751 = sbr.rel (%p749) target = $region68
        $region67: #{tpu_custom_call.1} parent=55 // pred_region
          %753 = vsyncadd %s715, 0
          %s754 = sadd.s32 %s34, %s33
          %s755 = smul.addr %s754, 4
          %s756 = scalar_lea.hbm %s11, %s755
          %s758 = sshll.u32 %s718, 4
          %s759 = int_to_ptr.vmem [resolvable:$true] %s758
          %s760 = sshll.u32 %s756, 4
          %s761 = int_to_ptr.hbm [resolvable:$true] %s760
          %763 = dma.vmem_to_hbm [thread:$0]  %s759, 64, %s761, %s715
        $region68: #{tpu_custom_call.1} parent=55 // pred_fallthru
          _
      $region56: #{tpu_custom_call.1} parent=5 // pred_fallthru
        _
      %p764 = scmp.le.s32.totalorder 2, %s24
      // Predicated region
      $region69: #{tpu_custom_call.1} parent=5 // pred_check
        %p765 = pneg %p764
      $region70: #{tpu_custom_call.1} parent=5 // pred_check_branch
        %767 = sbr.rel (%p765) target = $region72
      $region71: #{tpu_custom_call.1} parent=5 // pred_region
        %s768 = ssub.s32 %s24, 2
        // Predicated region
        $region73: #{tpu_custom_call.1} parent=71 // pred_check
          %p769 = pneg %p283
        $region74: #{tpu_custom_call.1} parent=71 // pred_check_branch
          %771 = sbr.rel (%p769) target = $region76
        $region75: #{tpu_custom_call.1} parent=71 // pred_region
          %s772 = sand.u32 %s268, 1
          %s773 = scalar_lea.sflag [#allocation3], %s772
          %s774 = sand.u32 %s268, 1
          %s775 = smul.addr %s774, 4
          %s776 = scalar_lea.vmem [#allocation2], %s775
          %778 = dma.done %s773, 64
        $region76: #{tpu_custom_call.1} parent=71 // pred_fallthru
          _
        // Predicated region
        $region77: #{tpu_custom_call.1} parent=71 // pred_check
          %p779 = pneg %p311
        $region78: #{tpu_custom_call.1} parent=71 // pred_check_branch
          %781 = sbr.rel (%p779) target = $region80
        $region79: #{tpu_custom_call.1} parent=71 // pred_region
          %s782 = sand.u32 %s30, 1
          %s783 = scalar_lea.sflag [#allocation5], %s782
          %s784 = sand.u32 %s296, 1
          %s785 = smul.addr %s784, 4
          %s786 = scalar_lea.vmem [#allocation4], %s785
          %788 = dma.done %s783, 64
        $region80: #{tpu_custom_call.1} parent=71 // pred_fallthru
          _
        // Predicated region
        $region81: #{tpu_custom_call.1} parent=71 // pred_check
          %p789 = pneg %p339
        $region82: #{tpu_custom_call.1} parent=71 // pred_check_branch
          %791 = sbr.rel (%p789) target = $region84
        $region83: #{tpu_custom_call.1} parent=71 // pred_region
          %s792 = sand.u32 %s30, 1
          %s793 = scalar_lea.sflag [#allocation5], %s792
          %s794 = sand.u32 %s324, 1
          %s795 = smul.addr %s794, 4
          %s796 = scalar_lea.vmem [#allocation6], %s795
          %798 = dma.done %s793, 64
        $region84: #{tpu_custom_call.1} parent=71 // pred_fallthru
          _
      $region72: #{tpu_custom_call.1} parent=5 // pred_fallthru
        _
    $region6: #{tpu_custom_call.1} parent=1 // loop_footer
      %s28 = sadd.s32 1, %s24
    $region7: #{tpu_custom_call.1} parent=1 // loop_footer_branch
      %23 = sbr.rel target = $region3
    $region8: #{tpu_custom_call.1} parent=1 // loop_exit
      _
    %799 = vsyncpa [#allocation3], 1
    %s800 = scalar_lea.sflag [#allocation3], 1
    %801 = vsyncpa %s800, 1
    %802 = vsyncpa [#allocation5], 1
    %s803 = scalar_lea.sflag [#allocation5], 1
    %804 = vsyncpa %s803, 1

// kernel: tpu_custom_call.1
$region0: #{tpu_custom_call.1}
  #allocation0 [shape = 'u32[]', space=smem, size = 0x4, offset = 0x4, fixed_abs, tag = 'smem constant byte address 0x4 - core index']
  #allocation1 [shape = 'u32[72,128]{1,0:T(1,128)}', space=vmem, size = 0x9000, scoped, tag = 'internal scratch']
  %s0 = inlined_call_operand.vmem [shape: f32[2,8,64], index: 0, kind: input, shape index: {}]
  %s1 = inlined_call_operand.vmem [shape: f32[8,64], index: 1, kind: input, shape index: {}]
  %s2 = inlined_call_operand.vmem [shape: f32[8,64], index: 2, kind: input, shape index: {}]
  %s3 = inlined_call_operand.vmem [shape: f32[8,32], index: 3, kind: input, shape index: {}]
  %s4 = inlined_call_operand.vmem [shape: f32[8,32], index: 4, kind: input, shape index: {}]
  %s5 = inlined_call_operand.vmem [shape: f32[1,64], index: 5, kind: input, shape index: {}]
  %s6 = inlined_call_operand.vmem [shape: bf16[64,64], index: 6, kind: input, shape index: {}]
  %s7 = inlined_call_operand.vmem [shape: bf16[64,32], index: 7, kind: input, shape index: {}]
  %s8 = inlined_call_operand.vmem [shape: bf16[64,32], index: 8, kind: input, shape index: {}]
  %s9 = inlined_call_operand.hbm [shape: bf16[2,8,64], index: 9, kind: output, shape index: {0}]
  %s10 = inlined_call_operand.hbm [shape: bf16[2,8,32], index: 10, kind: output, shape index: {1}]
  %s11 = inlined_call_operand.hbm [shape: bf16[2,8,32], index: 11, kind: output, shape index: {2}]
  %12 = xla_tuple %s9, %s10, %s11
  %s13 = sld [smem:[#allocation0]]
  $region85: #{tpu_custom_call.1} parent=0
    _
  %s15 = ssub.s32 1, %s13
  %s16 = scalar_select 0, %s15, %s13
  $region1: #{tpu_custom_call.1} parent=0
    #allocation2 [shape = 'u8[4096]{0}', space=vmem, size = 0x1000, scoped, tag = 'output window, operand 0']
    #allocation3 [shape = 's32[2]{0}', space=sflag, size = 0x8, scoped, tag = 'scoped memory for tpu_custom_call.1']
    #allocation4 [shape = 'u8[4096]{0}', space=vmem, size = 0x1000, scoped, tag = 'output window, operand 1']
    #allocation5 [shape = 's32[2]{0}', space=sflag, size = 0x8, scoped, tag = 'scoped memory for tpu_custom_call.1']
    #allocation6 [shape = 'u8[4096]{0}', space=vmem, size = 0x1000, scoped, tag = 'output window, operand 2']
    %17 = vsyncpa [#allocation3], 0
    %s18 = scalar_lea.sflag [#allocation3], 1
    %19 = vsyncpa %s18, 0
    %20 = vsyncpa [#allocation5], 0
    %s21 = scalar_lea.sflag [#allocation5], 1
    %22 = vsyncpa %s21, 0
    loop: start=0, step=1, limit=4
    $region2: #{tpu_custom_call.1} parent=1 // loop_pre_header
      _
    $region3: #{tpu_custom_call.1} parent=1 // loop_header
      %s24 = sphi 0, %s28
      %p25 = scmp.ge.s32.totalorder %s24, 4
      %s31 = sphi 0, %s43
      %s32 = sphi 0, %s39
      %s33 = sphi 0, %s31
      %s34 = sphi 0, %s32
      %s35 = sphi 0, %s33
      %s36 = sphi 0, %s34
      %s48 = sphi 0, %s50
      %s51 = sphi 0, %s48
      %s52 = sphi 0, %s51
      %s68 = sphi 0, %s52
      %s74 = sphi 0, %s76
      %s77 = sphi 0, %s74
      %s78 = sphi 0, %s77
      %s94 = sphi 0, %s78
      %s100 = sphi 0, %s102
      %s103 = sphi 0, %s100
      %s104 = sphi 0, %s103
      %s120 = sphi 0, %s104
      %s126 = sphi 0, %s128
      %s129 = sphi 0, %s126
      %s130 = sphi 0, %s129
      %s146 = sphi 0, %s130
      %s152 = sphi 0, %s154
      %s155 = sphi 0, %s152
      %s156 = sphi 0, %s155
      %s172 = sphi 0, %s156
      %s176 = sphi 0, %s176
      %s178 = sphi 0, %s176
      %s179 = sphi 0, %s178
      %s193 = sphi 0, %s179
      %s197 = sphi 0, %s197
      %s199 = sphi 0, %s197
      %s200 = sphi 0, %s199
      %s214 = sphi 0, %s200
      %s218 = sphi 0, %s218
      %s220 = sphi 0, %s218
      %s221 = sphi 0, %s220
      %s235 = sphi 0, %s221
      %s239 = sphi 0, %s239
      %s241 = sphi 0, %s239
      %s242 = sphi 0, %s241
      %s256 = sphi 0, %s242
      %s264 = sphi 0, %s266
      %s267 = sphi 0, %s264
      %s268 = sphi 0, %s267
      %s284 = sphi 0, %s268
      %s292 = sphi 0, %s294
      %s295 = sphi 0, %s292
      %s296 = sphi 0, %s295
      %s312 = sphi 0, %s296
      %s320 = sphi 0, %s322
      %s323 = sphi 0, %s320
      %s324 = sphi 0, %s323
      %s340 = sphi 0, %s324
    $region4: #{tpu_custom_call.1} parent=1 // loop_header_branch
      %27 = sbr.rel (%p25) target = $region8
    $region5: #{tpu_custom_call.1} parent=1 // loop_body
      %s29 = ssub.s32 %s24, 1
      %s30 = ssub.s32 %s24, 2
      %s37 = sadd.s32 1, %s32
      %p38 = scmp.ge.s32.totalorder %s37, 1
      %s39 = scalar_select %p38, 0, %s37
      %s40 = sadd.s32 1, %s31
      %s41 = scalar_select %p38, %s40, %s31
      %p42 = scmp.ge.s32.totalorder %s41, 2
      %s43 = scalar_select %p42, 0, %s41
      %s44 = ssub.s32 %s31, %s43
      %s45 = ssub.s32 %s32, %s39
      %s46 = sor.u32 %s44, %s45
      %p47 = scmp.eq.s32.totalorder %s46, 0
      %s49 = sadd.s32 %s48, 1
      %s50 = scalar_select %p47, %s48, %s49
      %p53 = pneg %p47
      %p54 = scmp.eq.s32.totalorder %s24, 1
      %p55 = por %p53, %p54
      %p56 = scmp.ne.s32.totalorder %s48, %s51
      %p57 = scmp.eq.s32.totalorder %s24, 0
      %p58 = por %p56, %p57
      %p59 = scmp.ne.s32.totalorder %s48, %s51
      %p60 = scmp.eq.s32.totalorder %s29, 1
      %p61 = por %p59, %p60
      %p62 = scmp.ne.s32.totalorder %s51, %s52
      %p63 = scmp.eq.s32.totalorder %s29, 0
      %p64 = por %p62, %p63
      %p65 = scmp.ne.s32.totalorder %s51, %s52
      %p66 = scmp.eq.s32.totalorder %s30, 1
      %p67 = por %p65, %p66
      %p69 = scmp.ne.s32.totalorder %s52, %s68
      %p70 = scmp.eq.s32.totalorder %s30, 0
      %p71 = por %p69, %p70
      %s72 = ssub.s32 %s32, %s39
      %p73 = scmp.eq.s32.totalorder %s72, 0
      %s75 = sadd.s32 %s74, 1
      %s76 = scalar_select %p73, %s74, %s75
      %p79 = pneg %p73
      %p80 = scmp.eq.s32.totalorder %s24, 1
      %p81 = por %p79, %p80
      %p82 = scmp.ne.s32.totalorder %s74, %s77
      %p83 = scmp.eq.s32.totalorder %s24, 0
      %p84 = por %p82, %p83
      %p85 = scmp.ne.s32.totalorder %s74, %s77
      %p86 = scmp.eq.s32.totalorder %s29, 1
      %p87 = por %p85, %p86
      %p88 = scmp.ne.s32.totalorder %s77, %s78
      %p89 = scmp.eq.s32.totalorder %s29, 0
      %p90 = por %p88, %p89
      %p91 = scmp.ne.s32.totalorder %s77, %s78
      %p92 = scmp.eq.s32.totalorder %s30, 1
      %p93 = por %p91, %p92
      %p95 = scmp.ne.s32.totalorder %s78, %s94
      %p96 = scmp.eq.s32.totalorder %s30, 0
      %p97 = por %p95, %p96
      %s98 = ssub.s32 %s32, %s39
      %p99 = scmp.eq.s32.totalorder %s98, 0
      %s101 = sadd.s32 %s100, 1
      %s102 = scalar_select %p99, %s100, %s101
      %p105 = pneg %p99
      %p106 = scmp.eq.s32.totalorder %s24, 1
      %p107 = por %p105, %p106
      %p108 = scmp.ne.s32.totalorder %s100, %s103
      %p109 = scmp.eq.s32.totalorder %s24, 0
      %p110 = por %p108, %p109
      %p111 = scmp.ne.s32.totalorder %s100, %s103
      %p112 = scmp.eq.s32.totalorder %s29, 1
      %p113 = por %p111, %p112
      %p114 = scmp.ne.s32.totalorder %s103, %s104
      %p115 = scmp.eq.s32.totalorder %s29, 0
      %p116 = por %p114, %p115
      %p117 = scmp.ne.s32.totalorder %s103, %s104
      %p118 = scmp.eq.s32.totalorder %s30, 1
      %p119 = por %p117, %p118
      %p121 = scmp.ne.s32.totalorder %s104, %s120
      %p122 = scmp.eq.s32.totalorder %s30, 0
      %p123 = por %p121, %p122
      %s124 = ssub.s32 %s32, %s39
      %p125 = scmp.eq.s32.totalorder %s124, 0
      %s127 = sadd.s32 %s126, 1
      %s128 = scalar_select %p125, %s126, %s127
      %p131 = pneg %p125
      %p132 = scmp.eq.s32.totalorder %s24, 1
      %p133 = por %p131, %p132
      %p134 = scmp.ne.s32.totalorder %s126, %s129
      %p135 = scmp.eq.s32.totalorder %s24, 0
      %p136 = por %p134, %p135
      %p137 = scmp.ne.s32.totalorder %s126, %s129
      %p138 = scmp.eq.s32.totalorder %s29, 1
      %p139 = por %p137, %p138
      %p140 = scmp.ne.s32.totalorder %s129, %s130
      %p141 = scmp.eq.s32.totalorder %s29, 0
      %p142 = por %p140, %p141
      %p143 = scmp.ne.s32.totalorder %s129, %s130
      %p144 = scmp.eq.s32.totalorder %s30, 1
      %p145 = por %p143, %p144
      %p147 = scmp.ne.s32.totalorder %s130, %s146
      %p148 = scmp.eq.s32.totalorder %s30, 0
      %p149 = por %p147, %p148
      %s150 = ssub.s32 %s32, %s39
      %p151 = scmp.eq.s32.totalorder %s150, 0
      %s153 = sadd.s32 %s152, 1
      %s154 = scalar_select %p151, %s152, %s153
      %p157 = pneg %p151
      %p158 = scmp.eq.s32.totalorder %s24, 1
      %p159 = por %p157, %p158
      %p160 = scmp.ne.s32.totalorder %s152, %s155
      %p161 = scmp.eq.s32.totalorder %s24, 0
      %p162 = por %p160, %p161
      %p163 = scmp.ne.s32.totalorder %s152, %s155
      %p164 = scmp.eq.s32.totalorder %s29, 1
      %p165 = por %p163, %p164
      %p166 = scmp.ne.s32.totalorder %s155, %s156
      %p167 = scmp.eq.s32.totalorder %s29, 0
      %p168 = por %p166, %p167
      %p169 = scmp.ne.s32.totalorder %s155, %s156
      %p170 = scmp.eq.s32.totalorder %s30, 1
      %p171 = por %p169, %p170
      %p173 = scmp.ne.s32.totalorder %s156, %s172
      %p174 = scmp.eq.s32.totalorder %s30, 0
      %p175 = por %p173, %p174
      %s177 = sadd.s32 %s176, 1
      %p180 = scmp.eq.s32.totalorder %s24, 1
      %p181 = scmp.ne.s32.totalorder %s176, %s178
      %p182 = scmp.eq.s32.totalorder %s24, 0
      %p183 = por %p181, %p182
      %p184 = scmp.ne.s32.totalorder %s176, %s178
      %p185 = scmp.eq.s32.totalorder %s29, 1
      %p186 = por %p184, %p185
      %p187 = scmp.ne.s32.totalorder %s178, %s179
      %p188 = scmp.eq.s32.totalorder %s29, 0
      %p189 = por %p187, %p188
      %p190 = scmp.ne.s32.totalorder %s178, %s179
      %p191 = scmp.eq.s32.totalorder %s30, 1
      %p192 = por %p190, %p191
      %p194 = scmp.ne.s32.totalorder %s179, %s193
      %p195 = scmp.eq.s32.totalorder %s30, 0
      %p196 = por %p194, %p195
      %s198 = sadd.s32 %s197, 1
      %p201 = scmp.eq.s32.totalorder %s24, 1
      %p202 = scmp.ne.s32.totalorder %s197, %s199
      %p203 = scmp.eq.s32.totalorder %s24, 0
      %p204 = por %p202, %p203
      %p205 = scmp.ne.s32.totalorder %s197, %s199
      %p206 = scmp.eq.s32.totalorder %s29, 1
      %p207 = por %p205, %p206
      %p208 = scmp.ne.s32.totalorder %s199, %s200
      %p209 = scmp.eq.s32.totalorder %s29, 0
      %p210 = por %p208, %p209
      %p211 = scmp.ne.s32.totalorder %s199, %s200
      %p212 = scmp.eq.s32.totalorder %s30, 1
      %p213 = por %p211, %p212
      %p215 = scmp.ne.s32.totalorder %s200, %s214
      %p216 = scmp.eq.s32.totalorder %s30, 0
      %p217 = por %p215, %p216
      %s219 = sadd.s32 %s218, 1
      %p222 = scmp.eq.s32.totalorder %s24, 1
      %p223 = scmp.ne.s32.totalorder %s218, %s220
      %p224 = scmp.eq.s32.totalorder %s24, 0
      %p225 = por %p223, %p224
      %p226 = scmp.ne.s32.totalorder %s218, %s220
      %p227 = scmp.eq.s32.totalorder %s29, 1
      %p228 = por %p226, %p227
      %p229 = scmp.ne.s32.totalorder %s220, %s221
      %p230 = scmp.eq.s32.totalorder %s29, 0
      %p231 = por %p229, %p230
      %p232 = scmp.ne.s32.totalorder %s220, %s221
      %p233 = scmp.eq.s32.totalorder %s30, 1
      %p234 = por %p232, %p233
      %p236 = scmp.ne.s32.totalorder %s221, %s235
      %p237 = scmp.eq.s32.totalorder %s30, 0
      %p238 = por %p236, %p237
      %s240 = sadd.s32 %s239, 1
      %p243 = scmp.eq.s32.totalorder %s24, 1
      %p244 = scmp.ne.s32.totalorder %s239, %s241
      %p245 = scmp.eq.s32.totalorder %s24, 0
      %p246 = por %p244, %p245
      %p247 = scmp.ne.s32.totalorder %s239, %s241
      %p248 = scmp.eq.s32.totalorder %s29, 1
      %p249 = por %p247, %p248
      %p250 = scmp.ne.s32.totalorder %s241, %s242
      %p251 = scmp.eq.s32.totalorder %s29, 0
      %p252 = por %p250, %p251
      %p253 = scmp.ne.s32.totalorder %s241, %s242
      %p254 = scmp.eq.s32.totalorder %s30, 1
      %p255 = por %p253, %p254
      %p257 = scmp.ne.s32.totalorder %s242, %s256
      %p258 = scmp.eq.s32.totalorder %s30, 0
      %p259 = por %p257, %p258
      %s260 = ssub.s32 %s31, %s43
      %s261 = ssub.s32 %s32, %s39
      %s262 = sor.u32 %s260, %s261
      %p263 = scmp.eq.s32.totalorder %s262, 0
      %s265 = sadd.s32 %s264, 1
      %s266 = scalar_select %p263, %s264, %s265
      %p269 = pneg %p263
      %p270 = scmp.eq.s32.totalorder %s24, 1
      %p271 = por %p269, %p270
      %p272 = scmp.ne.s32.totalorder %s264, %s267
      %p273 = scmp.eq.s32.totalorder %s24, 0
      %p274 = por %p272, %p273
      %p275 = scmp.ne.s32.totalorder %s264, %s267
      %p276 = scmp.eq.s32.totalorder %s29, 1
      %p277 = por %p275, %p276
      %p278 = scmp.ne.s32.totalorder %s267, %s268
      %p279 = scmp.eq.s32.totalorder %s29, 0
      %p280 = por %p278, %p279
      %p281 = scmp.ne.s32.totalorder %s267, %s268
      %p282 = scmp.eq.s32.totalorder %s30, 1
      %p283 = por %p281, %p282
      %p285 = scmp.ne.s32.totalorder %s268, %s284
      %p286 = scmp.eq.s32.totalorder %s30, 0
      %p287 = por %p285, %p286
      %s288 = ssub.s32 %s31, %s43
      %s289 = ssub.s32 %s32, %s39
      %s290 = sor.u32 %s288, %s289
      %p291 = scmp.eq.s32.totalorder %s290, 0
      %s293 = sadd.s32 %s292, 1
      %s294 = scalar_select %p291, %s292, %s293
      %p297 = pneg %p291
      %p298 = scmp.eq.s32.totalorder %s24, 1
      %p299 = por %p297, %p298
      %p300 = scmp.ne.s32.totalorder %s292, %s295
      %p301 = scmp.eq.s32.totalorder %s24, 0
      %p302 = por %p300, %p301
      %p303 = scmp.ne.s32.totalorder %s292, %s295
      %p304 = scmp.eq.s32.totalorder %s29, 1
      %p305 = por %p303, %p304
      %p306 = scmp.ne.s32.totalorder %s295, %s296
      %p307 = scmp.eq.s32.totalorder %s29, 0
      %p308 = por %p306, %p307
      %p309 = scmp.ne.s32.totalorder %s295, %s296
      %p310 = scmp.eq.s32.totalorder %s30, 1
      %p311 = por %p309, %p310
      %p313 = scmp.ne.s32.totalorder %s296, %s312
      %p314 = scmp.eq.s32.totalorder %s30, 0
      %p315 = por %p313, %p314
      %s316 = ssub.s32 %s31, %s43
      %s317 = ssub.s32 %s32, %s39
      %s318 = sor.u32 %s316, %s317
      %p319 = scmp.eq.s32.totalorder %s318, 0
      %s321 = sadd.s32 %s320, 1
      %s322 = scalar_select %p319, %s320, %s321
      %p325 = pneg %p319
      %p326 = scmp.eq.s32.totalorder %s24, 1
      %p327 = por %p325, %p326
      %p328 = scmp.ne.s32.totalorder %s320, %s323
      %p329 = scmp.eq.s32.totalorder %s24, 0
      %p330 = por %p328, %p329
      %p331 = scmp.ne.s32.totalorder %s320, %s323
      %p332 = scmp.eq.s32.totalorder %s29, 1
      %p333 = por %p331, %p332
      %p334 = scmp.ne.s32.totalorder %s323, %s324
      %p335 = scmp.eq.s32.totalorder %s29, 0
      %p336 = por %p334, %p335
      %p337 = scmp.ne.s32.totalorder %s323, %s324
      %p338 = scmp.eq.s32.totalorder %s30, 1
      %p339 = por %p337, %p338
      %p341 = scmp.ne.s32.totalorder %s324, %s340
      %p342 = scmp.eq.s32.totalorder %s30, 0
      %p343 = por %p341, %p342
      %p344 = scmp.le.s32.totalorder 1, %s24
      %p345 = scmp.lt.s32.totalorder %s24, 3
      %p346 = pnand %p344, %p345
      %p347 = pneg %p346
      // Predicated region
      $region9: #{tpu_custom_call.1} parent=5 // pred_check
        _
      $region10: #{tpu_custom_call.1} parent=5 // pred_check_branch
        %349 = sbr.rel (%p346) target = $region12
      $region11: #{tpu_custom_call.1} parent=5 // pred_region
        %s350 = ssub.s32 %s24, 1
        // Predicated region
        $region13: #{tpu_custom_call.1} parent=11 // pred_check
          %p351 = pneg %p90
        $region14: #{tpu_custom_call.1} parent=11 // pred_check_branch
          %353 = sbr.rel (%p351) target = $region16
        $region15: #{tpu_custom_call.1} parent=11 // pred_region
          %p354 = scmp.lt.s32.totalorder %s34, 0
          %s355 = scalar_select %p354, %s34, 0
          %s356 = smul.addr %s355, 8
          %s357 = scalar_lea.vmem %s1, %s356
        $region16: #{tpu_custom_call.1} parent=11 // pred_fallthru
          _
        // Predicated region
        $region17: #{tpu_custom_call.1} parent=11 // pred_check
          %p358 = pneg %p116
        $region18: #{tpu_custom_call.1} parent=11 // pred_check_branch
          %360 = sbr.rel (%p358) target = $region20
        $region19: #{tpu_custom_call.1} parent=11 // pred_region
          %p361 = scmp.lt.s32.totalorder %s34, 0
          %s362 = scalar_select %p361, %s34, 0
          %s363 = smul.addr %s362, 8
          %s364 = scalar_lea.vmem %s2, %s363
        $region20: #{tpu_custom_call.1} parent=11 // pred_fallthru
          _
        // Predicated region
        $region21: #{tpu_custom_call.1} parent=11 // pred_check
          %p365 = pneg %p142
        $region22: #{tpu_custom_call.1} parent=11 // pred_check_branch
          %367 = sbr.rel (%p365) target = $region24
        $region23: #{tpu_custom_call.1} parent=11 // pred_region
          %p368 = scmp.lt.s32.totalorder %s34, 0
          %s369 = scalar_select %p368, %s34, 0
          %s370 = smul.addr %s369, 8
          %s371 = scalar_lea.vmem %s3, %s370
        $region24: #{tpu_custom_call.1} parent=11 // pred_fallthru
          _
        // Predicated region
        $region25: #{tpu_custom_call.1} parent=11 // pred_check
          %p372 = pneg %p168
        $region26: #{tpu_custom_call.1} parent=11 // pred_check_branch
          %374 = sbr.rel (%p372) target = $region28
        $region27: #{tpu_custom_call.1} parent=11 // pred_region
          %p375 = scmp.lt.s32.totalorder %s34, 0
          %s376 = scalar_select %p375, %s34, 0
          %s377 = smul.addr %s376, 8
          %s378 = scalar_lea.vmem %s4, %s377
        $region28: #{tpu_custom_call.1} parent=11 // pred_fallthru
          _
        // Predicated region
        $region29: #{tpu_custom_call.1} parent=11 // pred_check
          %p379 = pneg %p189
        $region30: #{tpu_custom_call.1} parent=11 // pred_check_branch
          %381 = sbr.rel (%p379) target = $region32
        $region31: #{tpu_custom_call.1} parent=11 // pred_region
          _
        $region32: #{tpu_custom_call.1} parent=11 // pred_fallthru
          _
        // Predicated region
        $region33: #{tpu_custom_call.1} parent=11 // pred_check
          %p382 = pneg %p210
        $region34: #{tpu_custom_call.1} parent=11 // pred_check_branch
          %384 = sbr.rel (%p382) target = $region36
        $region35: #{tpu_custom_call.1} parent=11 // pred_region
          _
        $region36: #{tpu_custom_call.1} parent=11 // pred_fallthru
          _
        // Predicated region
        $region37: #{tpu_custom_call.1} parent=11 // pred_check
          %p385 = pneg %p231
        $region38: #{tpu_custom_call.1} parent=11 // pred_check_branch
          %387 = sbr.rel (%p385) target = $region40
        $region39: #{tpu_custom_call.1} parent=11 // pred_region
          _
        $region40: #{tpu_custom_call.1} parent=11 // pred_fallthru
          _
        // Predicated region
        $region41: #{tpu_custom_call.1} parent=11 // pred_check
          %p388 = pneg %p252
        $region42: #{tpu_custom_call.1} parent=11 // pred_check_branch
          %390 = sbr.rel (%p388) target = $region44
        $region43: #{tpu_custom_call.1} parent=11 // pred_region
          _
        $region44: #{tpu_custom_call.1} parent=11 // pred_fallthru
          _
      $region12: #{tpu_custom_call.1} parent=5 // pred_fallthru
        _
      %p391 = scmp.lt.s32.totalorder %s24, 2
      // Predicated region
      $region45: #{tpu_custom_call.1} parent=5 // pred_check
        %p392 = pneg %p391
      $region46: #{tpu_custom_call.1} parent=5 // pred_check_branch
        %394 = sbr.rel (%p392) target = $region48
      $region47: #{tpu_custom_call.1} parent=5 // pred_region
        // Predicated region
        $region49: #{tpu_custom_call.1} parent=47 // pred_check
          %p395 = pneg %p58
        $region50: #{tpu_custom_call.1} parent=47 // pred_check_branch
          %397 = sbr.rel (%p395) target = $region52
        $region51: #{tpu_custom_call.1} parent=47 // pred_region
          %p398 = scmp.lt.s32.totalorder %s31, 1
          %s399 = scalar_select %p398, %s31, 1
          %p400 = scmp.lt.s32.totalorder %s32, 0
          %s401 = scalar_select %p400, %s32, 0
          %s402 = sadd.s32 %s401, %s399
          %s403 = smul.addr %s402, 8
          %s404 = scalar_lea.vmem %s0, %s403
        $region52: #{tpu_custom_call.1} parent=47 // pred_fallthru
          _
      $region48: #{tpu_custom_call.1} parent=5 // pred_fallthru
        _
      %p405 = scmp.le.s32.totalorder 1, %s24
      %p406 = scmp.lt.s32.totalorder %s24, 3
      %p407 = pnand %p405, %p406
      %p408 = pneg %p407
      // Predicated region
      $region53: #{tpu_custom_call.1} parent=5 // pred_check
        _
      $region54: #{tpu_custom_call.1} parent=5 // pred_check_branch
        %410 = sbr.rel (%p407) target = $region56
      $region55: #{tpu_custom_call.1} parent=5 // pred_region
        %s411 = ssub.s32 %s24, 1
        %p412 = scmp.lt.s32.totalorder %s33, 1
        %s413 = scalar_select %p412, %s33, 1
        %p414 = scmp.lt.s32.totalorder %s34, 0
        %s415 = scalar_select %p414, %s34, 0
        %s416 = sadd.s32 %s415, %s413
        %s417 = smul.addr %s416, 8
        %s418 = scalar_lea.vmem %s0, %s417
        %p419 = pneg %p64
        %p420 = pneg %p61
        %p421 = scmp.lt.s32.totalorder %s34, 0
        %s422 = scalar_select %p421, %s34, 0
        %s423 = smul.addr %s422, 8
        %s424 = scalar_lea.vmem %s1, %s423
        %p425 = pneg %p90
        %p426 = pneg %p87
        %p427 = scmp.lt.s32.totalorder %s34, 0
        %s428 = scalar_select %p427, %s34, 0
        %s429 = smul.addr %s428, 8
        %s430 = scalar_lea.vmem %s2, %s429
        %p431 = pneg %p116
        %p432 = pneg %p113
        %p433 = scmp.lt.s32.totalorder %s34, 0
        %s434 = scalar_select %p433, %s34, 0
        %s435 = smul.addr %s434, 8
        %s436 = scalar_lea.vmem %s3, %s435
        %p437 = pneg %p142
        %p438 = pneg %p139
        %p439 = scmp.lt.s32.totalorder %s34, 0
        %s440 = scalar_select %p439, %s34, 0
        %s441 = smul.addr %s440, 8
        %s442 = scalar_lea.vmem %s4, %s441
        %p443 = pneg %p168
        %p444 = pneg %p165
        %p445 = pneg %p189
        %p446 = pneg %p186
        %p447 = pneg %p210
        %p448 = pneg %p207
        %p449 = pneg %p231
        %p450 = pneg %p228
        %p451 = pneg %p252
        %p452 = pneg %p249
        %p453 = pneg %p280
        %p454 = pneg %p277
        %s455 = sand.u32 %s267, 1
        %s456 = scalar_lea.sflag [#allocation3], %s455
        %s457 = sand.u32 %s267, 1
        %s458 = smul.addr %s457, 4
        %s459 = scalar_lea.vmem [#allocation2], %s458
        %p460 = pneg %p308
        %p461 = pneg %p305
        %s462 = sand.u32 %s29, 1
        %s463 = scalar_lea.sflag [#allocation5], %s462
        %s464 = sand.u32 %s295, 1
        %s465 = smul.addr %s464, 4
        %s466 = scalar_lea.vmem [#allocation4], %s465
        %p467 = pneg %p336
        %p468 = pneg %p333
        %s469 = sand.u32 %s29, 1
        %s470 = scalar_lea.sflag [#allocation5], %s469
        %s471 = sand.u32 %s323, 1
        %s472 = smul.addr %s471, 4
        %s473 = scalar_lea.vmem [#allocation6], %s472
        %p474 = scmp.lt.s32.totalorder %s33, 1
        %s475 = scalar_select %p474, %s33, 1
        %p476 = scmp.lt.s32.totalorder %s34, 0
        %s477 = scalar_select %p476, %s34, 0
        %s478 = sadd.s32 %s477, %s475
        %s479 = smul.addr %s478, 8
        %s480 = scalar_lea.vmem %s0, %s479
        %p481 = scmp.lt.s32.totalorder %s34, 0
        %s482 = scalar_select %p481, %s34, 0
        %s483 = smul.addr %s482, 8
        %s484 = scalar_lea.vmem %s1, %s483
        %p485 = scmp.lt.s32.totalorder %s34, 0
        %s486 = scalar_select %p485, %s34, 0
        %s487 = smul.addr %s486, 8
        %s488 = scalar_lea.vmem %s2, %s487
        %p489 = scmp.lt.s32.totalorder %s34, 0
        %s490 = scalar_select %p489, %s34, 0
        %s491 = smul.addr %s490, 8
        %s492 = scalar_lea.vmem %s3, %s491
        %p493 = scmp.lt.s32.totalorder %s34, 0
        %s494 = scalar_select %p493, %s34, 0
        %s495 = smul.addr %s494, 8
        %s496 = scalar_lea.vmem %s4, %s495
        %v498 = vld [vmem:[%s480] sm:$0xff]
        %v499 = vld [vmem:[%s5] sm:$0x1]
        %v500 = vmul.f32 %v498, %v498
        %vm501 = vcmask 523264
        %v502 = vsel %vm501, %v500, 0.0
        %503 = vadd.xlane.f32.xlu0 %v502
        %v504 = vpop.xlane.xlu0 %503
        %v505 = vrcp.pop 64.0
        %v506 = vmul.f32 64.0, %v505
        %v507 = vsub.f32 1.0, %v506
        %v508 = vmul.f32 %v505, %v507
        %v509 = vadd.f32 %v505, %v508
        %vm510 = vweird.f32 %v505
        %v511 = vsel %vm510, %v505, %v509
        %v512 = vmul.f32 %v504, %v511
        %v513 = vadd.f32 %v512, 1e-05
        %v514 = vrsqrt.pop %v513
        %v515 = vmul.f32 %v514, %v513
        %v516 = vmul.f32 %v515, %v514
        %v517 = vmul.f32 0.5, %v516
        %v518 = vsub.f32 1.5, %v517
        %v519 = vmul.f32 %v514, %v518
        %vm520 = vweird.f32 %v513
        %vm521 = vweird.f32 %v514
        %vm522 = vmor %vm520, %vm521
        %v523 = vsel %vm522, %v514, %v519
        %v524 = vmul.f32 %v498, %v523
        %v526 = vperm.slane %v499, 0
        %v528 = vmul.f32 %v524, %v526
        %v529 = vpack.c.bf16 %v528, %v528
        %v530 = vld [vmem:[%s6] sm:$0xf]
        %v531 = vld [vmem:[%s6 + $0x4] sm:$0xf]
        %v532 = vld [vmem:[%s6 + $0x8] sm:$0xf]
        %v533 = vld [vmem:[%s6 + $0xc] sm:$0xf]
        %v534 = vld [vmem:[%s6 + $0x10] sm:$0xf]
        %v535 = vld [vmem:[%s6 + $0x14] sm:$0xf]
        %v536 = vld [vmem:[%s6 + $0x18] sm:$0xf]
        %v537 = vld [vmem:[%s6 + $0x1c] sm:$0xf]
        %v546 = vunpack.c.l.b16 %v530
        %v547 = vunpack.c.l.b16 %v531
        %v548 = vunpack.c.l.b16 %v532
        %v549 = vunpack.c.l.b16 %v533
        %v550 = vunpack.c.l.b16 %v534
        %v551 = vunpack.c.l.b16 %v535
        %v552 = vunpack.c.l.b16 %v536
        %v553 = vunpack.c.l.b16 %v537
        %v554 = vpack.c.b16 %v547, %v546
        %v555 = vpack.c.b16 %v549, %v548
        %v556 = vpack.c.b16 %v551, %v550
        %v557 = vpack.c.b16 %v553, %v552
        %v563 = vsel %vm501, %v529, 0
        %565 = vmatpush.bf16.msra.mxu0 0
        %566 = vmatpush.bf16.msra.mxu0 0
        %567 = vmatpush.bf16.msra.mxu0 0
        %568 = vmatpush.bf16.msra.mxu0 0
        %569 = vmatpush.bf16.msra.mxu0 %v557
        %570 = vmatpush.bf16.msra.mxu0 %v556
        %571 = vmatpush.bf16.msra.mxu0 %v555
        %572 = vmatpush.bf16.msra.mxu0 %v554
        %573 = vmatmul.bf16.gmra.mxu0 %v563
        %v574 = vpop.f32.mrf.mxu0
        %v575 = vadd.f32 0.0, %v574
        %v576 = vpop.f32.mrf.mxu0
        %577 = vdwg.mxu0
        %v578 = vld [vmem:[%s7] sm:$0xf]
        %v579 = vld [vmem:[%s7 + $0x4] sm:$0xf]
        %v580 = vld [vmem:[%s7 + $0x8] sm:$0xf]
        %v581 = vld [vmem:[%s7 + $0xc] sm:$0xf]
        %v582 = vld [vmem:[%s7 + $0x10] sm:$0xf]
        %v583 = vld [vmem:[%s7 + $0x14] sm:$0xf]
        %v584 = vld [vmem:[%s7 + $0x18] sm:$0xf]
        %v585 = vld [vmem:[%s7 + $0x1c] sm:$0xf]
        %v594 = vunpack.c.l.b16 %v578
        %v595 = vunpack.c.l.b16 %v579
        %v596 = vunpack.c.l.b16 %v580
        %v597 = vunpack.c.l.b16 %v581
        %v598 = vunpack.c.l.b16 %v582
        %v599 = vunpack.c.l.b16 %v583
        %v600 = vunpack.c.l.b16 %v584
        %v601 = vunpack.c.l.b16 %v585
        %v602 = vpack.c.b16 %v595, %v594
        %v603 = vpack.c.b16 %v597, %v596
        %v604 = vpack.c.b16 %v599, %v598
        %v605 = vpack.c.b16 %v601, %v600
        %610 = vmatpush.bf16.msra.mxu0 0
        %611 = vmatpush.bf16.msra.mxu0 0
        %612 = vmatpush.bf16.msra.mxu0 0
        %613 = vmatpush.bf16.msra.mxu0 0
        %614 = vmatpush.bf16.msra.mxu0 %v605
        %615 = vmatpush.bf16.msra.mxu0 %v604
        %616 = vmatpush.bf16.msra.mxu0 %v603
        %617 = vmatpush.bf16.msra.mxu0 %v602
        %618 = vmatmul.bf16.gmra.mxu0 %v563
        %v619 = vpop.f32.mrf.mxu0
        %v620 = vadd.f32 0.0, %v619
        %v621 = vpop.f32.mrf.mxu0
        %622 = vdwg.mxu0
        %v623 = vld [vmem:[%s8] sm:$0xf]
        %v624 = vld [vmem:[%s8 + $0x4] sm:$0xf]
        %v625 = vld [vmem:[%s8 + $0x8] sm:$0xf]
        %v626 = vld [vmem:[%s8 + $0xc] sm:$0xf]
        %v627 = vld [vmem:[%s8 + $0x10] sm:$0xf]
        %v628 = vld [vmem:[%s8 + $0x14] sm:$0xf]
        %v629 = vld [vmem:[%s8 + $0x18] sm:$0xf]
        %v630 = vld [vmem:[%s8 + $0x1c] sm:$0xf]
        %v639 = vunpack.c.l.b16 %v623
        %v640 = vunpack.c.l.b16 %v624
        %v641 = vunpack.c.l.b16 %v625
        %v642 = vunpack.c.l.b16 %v626
        %v643 = vunpack.c.l.b16 %v627
        %v644 = vunpack.c.l.b16 %v628
        %v645 = vunpack.c.l.b16 %v629
        %v646 = vunpack.c.l.b16 %v630
        %v647 = vpack.c.b16 %v640, %v639
        %v648 = vpack.c.b16 %v642, %v641
        %v649 = vpack.c.b16 %v644, %v643
        %v650 = vpack.c.b16 %v646, %v645
        %655 = vmatpush.bf16.msra.mxu0 0
        %656 = vmatpush.bf16.msra.mxu0 0
        %657 = vmatpush.bf16.msra.mxu0 0
        %658 = vmatpush.bf16.msra.mxu0 0
        %659 = vmatpush.bf16.msra.mxu0 %v650
        %660 = vmatpush.bf16.msra.mxu0 %v649
        %661 = vmatpush.bf16.msra.mxu0 %v648
        %662 = vmatpush.bf16.msra.mxu0 %v647
        %663 = vmatmul.bf16.gmra.mxu0 %v563
        %v664 = vpop.f32.mrf.mxu0
        %v665 = vadd.f32 0.0, %v664
        %v666 = vpop.f32.mrf.mxu0
        %667 = vdwg.mxu0
        %v668 = vld [vmem:[%s484] sm:$0xff]
        %v669 = vmul.f32 %v575, %v668
        %671 = vrot.lane.b32.xlu0 %v575, 96
        %v672 = vpop.permute.xlu0 %671
        %674 = vrot.lane.b32.xlu0 %v575, 32
        %v675 = vpop.permute.xlu0 %674
        %vm677 = vcmask 261120
        %v678 = vsel %vm677, %v672, %v675
        %v679 = vld [vmem:[%s488] sm:$0xff]
        %v680 = vmul.f32 %v678, %v679
        %v681 = vadd.f32 %v669, %v680
        %v682 = vld [vmem:[%s492] sm:$0xff]
        %v683 = vmul.f32 %v620, %v682
        %685 = vrot.lane.b32.xlu0 %v620, 112
        %v686 = vpop.permute.xlu0 %685
        %688 = vrot.lane.b32.xlu0 %v620, 16
        %v689 = vpop.permute.xlu0 %688
        %vm691 = vcmask 130048
        %v692 = vsel %vm691, %v686, %v689
        %v693 = vld [vmem:[%s496] sm:$0xff]
        %v694 = vmul.f32 %v692, %v693
        %v695 = vadd.f32 %v683, %v694
        %v696 = vpack.c.bf16 %v681, %v681
        %vm697 = vcmask 519168
        %698 = vst.msk [vmem:[%s459] sm:$0xf] %vm697, %v696
        %v699 = vpack.c.bf16 %v695, %v695
        %vm700 = vcmask 257024
        %701 = vst.msk [vmem:[%s466] sm:$0xf] %vm700, %v699
        %v702 = vpack.c.bf16 %v665, %v665
        %703 = vst.msk [vmem:[%s473] sm:$0xf] %vm700, %v702
        %s704 = sand.u32 %s267, 1
        %s705 = scalar_lea.sflag [#allocation3], %s704
        %s706 = sand.u32 %s267, 1
        %s707 = smul.addr %s706, 4
        %s708 = scalar_lea.vmem [#allocation2], %s707
        %s709 = sand.u32 %s29, 1
        %s710 = scalar_lea.sflag [#allocation5], %s709
        %s711 = sand.u32 %s295, 1
        %s712 = smul.addr %s711, 4
        %s713 = scalar_lea.vmem [#allocation4], %s712
        %s714 = sand.u32 %s29, 1
        %s715 = scalar_lea.sflag [#allocation5], %s714
        %s716 = sand.u32 %s323, 1
        %s717 = smul.addr %s716, 4
        %s718 = scalar_lea.vmem [#allocation6], %s717
        // Predicated region
        $region57: #{tpu_custom_call.1} parent=55 // pred_check
          %p719 = pneg %p277
        $region58: #{tpu_custom_call.1} parent=55 // pred_check_branch
          %721 = sbr.rel (%p719) target = $region60
        $region59: #{tpu_custom_call.1} parent=55 // pred_region
          %723 = vsyncadd %s705, 0
          %s724 = sadd.s32 %s34, %s33
          %s725 = smul.addr %s724, 4
          %s726 = scalar_lea.hbm %s9, %s725
          %s728 = sshll.u32 %s708, 4
          %s729 = int_to_ptr.vmem [resolvable:$true] %s728
          %s730 = sshll.u32 %s726, 4
          %s731 = int_to_ptr.hbm [resolvable:$true] %s730
          %733 = dma.vmem_to_hbm [thread:$0]  %s729, 64, %s731, %s705
        $region60: #{tpu_custom_call.1} parent=55 // pred_fallthru
          _
        // Predicated region
        $region61: #{tpu_custom_call.1} parent=55 // pred_check
          %p734 = pneg %p305
        $region62: #{tpu_custom_call.1} parent=55 // pred_check_branch
          %736 = sbr.rel (%p734) target = $region64
        $region63: #{tpu_custom_call.1} parent=55 // pred_region
          %738 = vsyncadd %s710, 0
          %s739 = sadd.s32 %s34, %s33
          %s740 = smul.addr %s739, 4
          %s741 = scalar_lea.hbm %s10, %s740
          %s743 = sshll.u32 %s713, 4
          %s744 = int_to_ptr.vmem [resolvable:$true] %s743
          %s745 = sshll.u32 %s741, 4
          %s746 = int_to_ptr.hbm [resolvable:$true] %s745
          %748 = dma.vmem_to_hbm [thread:$0]  %s744, 64, %s746, %s710
        $region64: #{tpu_custom_call.1} parent=55 // pred_fallthru
          _
        // Predicated region
        $region65: #{tpu_custom_call.1} parent=55 // pred_check
          %p749 = pneg %p333
        $region66: #{tpu_custom_call.1} parent=55 // pred_check_branch
          %751 = sbr.rel (%p749) target = $region68
        $region67: #{tpu_custom_call.1} parent=55 // pred_region
          %753 = vsyncadd %s715, 0
          %s754 = sadd.s32 %s34, %s33
          %s755 = smul.addr %s754, 4
          %s756 = scalar_lea.hbm %s11, %s755
          %s758 = sshll.u32 %s718, 4
          %s759 = int_to_ptr.vmem [resolvable:$true] %s758
          %s760 = sshll.u32 %s756, 4
          %s761 = int_to_ptr.hbm [resolvable:$true] %s760
          %763 = dma.vmem_to_hbm [thread:$0]  %s759, 64, %s761, %s715
        $region68: #{tpu_custom_call.1} parent=55 // pred_fallthru
          _
      $region56: #{tpu_custom_call.1} parent=5 // pred_fallthru
        _
      %p764 = scmp.le.s32.totalorder 2, %s24
      // Predicated region
      $region69: #{tpu_custom_call.1} parent=5 // pred_check
        %p765 = pneg %p764
      $region70: #{tpu_custom_call.1} parent=5 // pred_check_branch
        %767 = sbr.rel (%p765) target = $region72
      $region71: #{tpu_custom_call.1} parent=5 // pred_region
        %s768 = ssub.s32 %s24, 2
        // Predicated region
        $region73: #{tpu_custom_call.1} parent=71 // pred_check
          %p769 = pneg %p283
        $region74: #{tpu_custom_call.1} parent=71 // pred_check_branch
          %771 = sbr.rel (%p769) target = $region76
        $region75: #{tpu_custom_call.1} parent=71 // pred_region
          %s772 = sand.u32 %s268, 1
          %s773 = scalar_lea.sflag [#allocation3], %s772
          %s774 = sand.u32 %s268, 1
          %s775 = smul.addr %s774, 4
          %s776 = scalar_lea.vmem [#allocation2], %s775
          %778 = dma.done %s773, 64
        $region76: #{tpu_custom_call.1} parent=71 // pred_fallthru
          _
        // Predicated region
        $region77: #{tpu_custom_call.1} parent=71 // pred_check
          %p779 = pneg %p311
        $region78: #{tpu_custom_call.1} parent=71 // pred_check_branch
          %781 = sbr.rel (%p779) target = $region80
        $region79: #{tpu_custom_call.1} parent=71 // pred_region
          %s782 = sand.u32 %s30, 1
          %s783 = scalar_lea.sflag [#allocation5], %s782
          %s784 = sand.u32 %s296, 1
          %s785 = smul.addr %s784, 4
          %s786 = scalar_lea.vmem [#allocation4], %s785
          %788 = dma.done %s783, 64
        $region80: #{tpu_custom_call.1} parent=71 // pred_fallthru
          _
        // Predicated region
        $region81: #{tpu_custom_call.1} parent=71 // pred_check
          %p789 = pneg %p339
        $region82: #{tpu_custom_call.1} parent=71 // pred_check_branch
          %791 = sbr.rel (%p789) target = $region84
        $region83: #{tpu_custom_call.1} parent=71 // pred_region
          %s792 = sand.u32 %s30, 1
          %s793 = scalar_lea.sflag [#allocation5], %s792
          %s794 = sand.u32 %s324, 1
          %s795 = smul.addr %s794, 4
          %s796 = scalar_lea.vmem [#allocation6], %s795
          %798 = dma.done %s793, 64
        $region84: #{tpu_custom_call.1} parent=71 // pred_fallthru
          _
      $region72: #{tpu_custom_call.1} parent=5 // pred_fallthru
        _
    $region6: #{tpu_custom_call.1} parent=1 // loop_footer
      %s28 = sadd.s32 1, %s24
    $region7: #{tpu_custom_call.1} parent=1 // loop_footer_branch
      %23 = sbr.rel target = $region3
    $region8: #{tpu_custom_call.1} parent=1 // loop_exit
      _
    %799 = vsyncpa [#allocation3], 1
    %s800 = scalar_lea.sflag [#allocation3], 1
    %801 = vsyncpa %s800, 1
    %802 = vsyncpa [#allocation5], 1
    %s803 = scalar_lea.sflag [#allocation5], 1
    %804 = vsyncpa %s803, 1

</llo_original>
